<compile_context>
chip_gen: v7x
topology: tpu7x:2x2x1
jax: 0.10.0
libtpu: 0.0.40
codegen_flags: <defaults>
</compile_context>

<pallas_src>
import jax
import jax.numpy as jnp
from jax.experimental import pallas as pl
from jax.experimental.pallas import tpu as pltpu


def _round_up(x, m):
    return (x + m - 1) // m * m


def fast_gt_conv_kernel(filt_ref, a_ref, o_ref):
    """VPU scale-add combine over one dense (TM, TN) slab per channel.

    filt_ref: (C_out, C_in) f32 in SMEM (read as scalars)
    a_ref:    (C_in, TM, TN) f32 tile in VMEM
    o_ref:    (C_out, TM, TN) f32 tile in VMEM
    """
    c_in = a_ref.shape[0]
    c_out = o_ref.shape[0]
    # C_out * C_in is tiny (e.g. 2 * 4): fully unrolled at trace time.
    for o in range(c_out):
        acc = filt_ref[o, 0] * a_ref[0]
        for c in range(1, c_in):
            acc = acc + filt_ref[o, c] * a_ref[c]
        o_ref[o] = acc


def _pick_tiles(n, c_in, c_out, itemsize, workset_budget_bytes):
    """Pick (TM, TN) so the double-buffered in+out blocks fit the VMEM budget."""
    cols = _round_up(n, 128)
    rows = _round_up(n, 8)
    per_elem = 2 * (c_in + c_out) * itemsize      # double-buffered input + output
    max_elems = max(workset_budget_bytes // per_elem, 8 * 128)
    # Lane dim as wide as possible (lane-dense stores), multiple of 128.
    tn = min(cols, max(128, (max_elems // 8) // 128 * 128))
    # Spend the rest of the budget on the sublane dim, multiple of 8.
    tm = min(rows, max(8, (max_elems // tn) // 8 * 8))
    return tm, tn


def fast_gt_conv(weight, A_dense, *,
                 vmem_workset_bytes=36 * 1024 * 1024,
                 vmem_limit_bytes=48 * 1024 * 1024):
    """Dense FastGTConv forward.

    weight:  (C_out, C_in) mixing logits.
    A_dense: (C_in, N, N)  dense adjacency per edge type.
    returns  (A_comb: (C_out, N, N), filter: (C_out, C_in)).
    """
    c_out, c_in = weight.shape
    ci, n, n2 = A_dense.shape
    assert ci == c_in and n2 == n

    # Softmax on the tiny weight: computed once in XLA, not per grid step.
    filt = jax.nn.softmax(weight.astype(jnp.float32), axis=1)

    a = A_dense.astype(jnp.float32)
    tm, tn = _pick_tiles(n, c_in, c_out, 4, vmem_workset_bytes)

    m_pad = _round_up(n, tm)
    n_pad = _round_up(n, tn)
    if (m_pad, n_pad) != (n, n):
        a = jnp.pad(a, ((0, 0), (0, m_pad - n), (0, n_pad - n)))

    grid = (m_pad // tm, n_pad // tn)

    out = pl.pallas_call(
        fast_gt_conv_kernel,
        out_shape=jax.ShapeDtypeStruct((c_out, m_pad, n_pad), jnp.float32),
        grid_spec=pltpu.PrefetchScalarGridSpec(
            num_scalar_prefetch=0,
            grid=grid,
            in_specs=[
                # Tiny mixing matrix lives whole in SMEM; read as scalars.
                pl.BlockSpec(memory_space=pltpu.MemorySpace.SMEM),
                # Dense per-channel slabs: full (8,128) tiles, auto double-buffered.
                pl.BlockSpec((c_in, tm, tn), lambda i, j: (0, i, j)),
            ],
            out_specs=pl.BlockSpec((c_out, tm, tn), lambda i, j: (0, i, j)),
        ),
        compiler_params=pltpu.CompilerParams(
            dimension_semantics=("parallel", "parallel"),
            vmem_limit_bytes=vmem_limit_bytes,
        ),
    )(filt, a)

    if (m_pad, n_pad) != (n, n):
        out = out[:, :n, :n]
    return out, filt


def reference(weight, A_dense):
    filt = jax.nn.softmax(weight, axis=1)
    comb = jnp.einsum('oc,cnm->onm', filt, A_dense,
                      precision=jax.lax.Precision.HIGHEST)
    return comb, filt


if __name__ == "__main__":
    in_channels = 4        # number of edge types (adjacency matrices)
    out_channels = 2       # number of output meta-path channels
    num_nodes = 256

    key = jax.random.PRNGKey(0)
    k_w, k_a, k_m = jax.random.split(key, 3)

    # nn.init.normal_(weight, std=0.1); args.non_local assumed False
    weight = 0.1 * jax.random.normal(k_w, (out_channels, in_channels),
                                     dtype=jnp.float32)

    # sparse-ish dense adjacencies (non-negative edge values on a random mask)
    vals = jax.random.uniform(k_a, (in_channels, num_nodes, num_nodes),
                              dtype=jnp.float32)
    mask = (jax.random.uniform(k_m, (in_channels, num_nodes, num_nodes))
            < 0.2).astype(jnp.float32)
    A_dense = vals * mask

    A_comb, W = fast_gt_conv(weight, A_dense)
    jax.block_until_ready((A_comb, W))

    A_ref, W_ref = reference(weight, A_dense)
    assert jnp.allclose(W, W_ref, rtol=1e-5, atol=1e-5), "filter mismatch"
    # VPU scale-add is exact f32, so tolerances can be tight.
    assert jnp.allclose(A_comb, A_ref, rtol=1e-5, atol=1e-5), "A_comb mismatch"

    print("KERNEL_OK")
</pallas_src>

<mosaic_0001>
module attributes {stable_mosaic.version = 11 : i64} {
  func.func @fast_gt_conv_kernel(%arg0: i32, %arg1: i32, %arg2: memref<2x4xf32, #tpu.memory_space<smem>>, %arg3: memref<4x256x256xf32, #tpu.memory_space<vmem>>, %arg4: memref<2x256x256xf32, #tpu.memory_space<vmem>>) attributes {dimension_semantics = [#tpu.dimension_semantics<parallel>, #tpu.dimension_semantics<parallel>], iteration_bounds = array<i64: 1, 1>, scalar_prefetch = 0 : i64, scratch_operands = 0 : i64, tpu.core_type = #tpu.core_type<tc>, window_params = [{transform_indices = @transform_0, window_bounds = array<i64: 2, 4>}, {transform_indices = @transform_1, window_bounds = array<i64: 4, 256, 256>}, {transform_indices = @transform_2, window_bounds = array<i64: 2, 256, 256>}]} {
    %c0 = arith.constant 0 : index
    %c0_0 = arith.constant 0 : index
    %0 = memref.load %arg2[%c0, %c0_0] : memref<2x4xf32, #tpu.memory_space<smem>>
    %c0_1 = arith.constant 0 : index
    %c0_2 = arith.constant 0 : index
    %c0_3 = arith.constant 0 : index
    %1 = vector.load %arg3[%c0_1, %c0_2, %c0_3] : memref<4x256x256xf32, #tpu.memory_space<vmem>>, vector<1x256x256xf32>
    %2 = vector.shape_cast %1 : vector<1x256x256xf32> to vector<256x256xf32>
    %3 = vector.broadcast %0 : f32 to vector<256x256xf32>
    %4 = arith.mulf %3, %2 : vector<256x256xf32>
    %c0_4 = arith.constant 0 : index
    %c1 = arith.constant 1 : index
    %5 = memref.load %arg2[%c0_4, %c1] : memref<2x4xf32, #tpu.memory_space<smem>>
    %c1_5 = arith.constant 1 : index
    %c0_6 = arith.constant 0 : index
    %c0_7 = arith.constant 0 : index
    %6 = vector.load %arg3[%c1_5, %c0_6, %c0_7] : memref<4x256x256xf32, #tpu.memory_space<vmem>>, vector<1x256x256xf32>
    %7 = vector.shape_cast %6 : vector<1x256x256xf32> to vector<256x256xf32>
    %8 = vector.broadcast %5 : f32 to vector<256x256xf32>
    %9 = arith.mulf %8, %7 : vector<256x256xf32>
    %10 = arith.addf %4, %9 : vector<256x256xf32>
    %c0_8 = arith.constant 0 : index
    %c2 = arith.constant 2 : index
    %11 = memref.load %arg2[%c0_8, %c2] : memref<2x4xf32, #tpu.memory_space<smem>>
    %c2_9 = arith.constant 2 : index
    %c0_10 = arith.constant 0 : index
    %c0_11 = arith.constant 0 : index
    %12 = vector.load %arg3[%c2_9, %c0_10, %c0_11] : memref<4x256x256xf32, #tpu.memory_space<vmem>>, vector<1x256x256xf32>
    %13 = vector.shape_cast %12 : vector<1x256x256xf32> to vector<256x256xf32>
    %14 = vector.broadcast %11 : f32 to vector<256x256xf32>
    %15 = arith.mulf %14, %13 : vector<256x256xf32>
    %16 = arith.addf %10, %15 : vector<256x256xf32>
    %c0_12 = arith.constant 0 : index
    %c3 = arith.constant 3 : index
    %17 = memref.load %arg2[%c0_12, %c3] : memref<2x4xf32, #tpu.memory_space<smem>>
    %c3_13 = arith.constant 3 : index
    %c0_14 = arith.constant 0 : index
    %c0_15 = arith.constant 0 : index
    %18 = vector.load %arg3[%c3_13, %c0_14, %c0_15] : memref<4x256x256xf32, #tpu.memory_space<vmem>>, vector<1x256x256xf32>
    %19 = vector.shape_cast %18 : vector<1x256x256xf32> to vector<256x256xf32>
    %20 = vector.broadcast %17 : f32 to vector<256x256xf32>
    %21 = arith.mulf %20, %19 : vector<256x256xf32>
    %22 = arith.addf %16, %21 : vector<256x256xf32>
    %c0_16 = arith.constant 0 : index
    %c0_17 = arith.constant 0 : index
    %c0_18 = arith.constant 0 : index
    %23 = vector.load %arg4[%c0_16, %c0_17, %c0_18] : memref<2x256x256xf32, #tpu.memory_space<vmem>>, vector<1x256x256xf32>
    %24 = vector.shape_cast %23 : vector<1x256x256xf32> to vector<256x256xf32>
    %25 = vector.shape_cast %22 : vector<256x256xf32> to vector<1x256x256xf32>
    tpu.vector_store %arg4[%c0_16, %c0_17, %c0_18], %25 {strides = array<i32>} : memref<2x256x256xf32, #tpu.memory_space<vmem>>, vector<1x256x256xf32>,
    %c1_19 = arith.constant 1 : index
    %c0_20 = arith.constant 0 : index
    %26 = memref.load %arg2[%c1_19, %c0_20] : memref<2x4xf32, #tpu.memory_space<smem>>
    %c0_21 = arith.constant 0 : index
    %c0_22 = arith.constant 0 : index
    %c0_23 = arith.constant 0 : index
    %27 = vector.load %arg3[%c0_21, %c0_22, %c0_23] : memref<4x256x256xf32, #tpu.memory_space<vmem>>, vector<1x256x256xf32>
    %28 = vector.shape_cast %27 : vector<1x256x256xf32> to vector<256x256xf32>
    %29 = vector.broadcast %26 : f32 to vector<256x256xf32>
    %30 = arith.mulf %29, %28 : vector<256x256xf32>
    %c1_24 = arith.constant 1 : index
    %c1_25 = arith.constant 1 : index
    %31 = memref.load %arg2[%c1_24, %c1_25] : memref<2x4xf32, #tpu.memory_space<smem>>
    %c1_26 = arith.constant 1 : index
    %c0_27 = arith.constant 0 : index
    %c0_28 = arith.constant 0 : index
    %32 = vector.load %arg3[%c1_26, %c0_27, %c0_28] : memref<4x256x256xf32, #tpu.memory_space<vmem>>, vector<1x256x256xf32>
    %33 = vector.shape_cast %32 : vector<1x256x256xf32> to vector<256x256xf32>
    %34 = vector.broadcast %31 : f32 to vector<256x256xf32>
    %35 = arith.mulf %34, %33 : vector<256x256xf32>
    %36 = arith.addf %30, %35 : vector<256x256xf32>
    %c1_29 = arith.constant 1 : index
    %c2_30 = arith.constant 2 : index
    %37 = memref.load %arg2[%c1_29, %c2_30] : memref<2x4xf32, #tpu.memory_space<smem>>
    %c2_31 = arith.constant 2 : index
    %c0_32 = arith.constant 0 : index
    %c0_33 = arith.constant 0 : index
    %38 = vector.load %arg3[%c2_31, %c0_32, %c0_33] : memref<4x256x256xf32, #tpu.memory_space<vmem>>, vector<1x256x256xf32>
    %39 = vector.shape_cast %38 : vector<1x256x256xf32> to vector<256x256xf32>
    %40 = vector.broadcast %37 : f32 to vector<256x256xf32>
    %41 = arith.mulf %40, %39 : vector<256x256xf32>
    %42 = arith.addf %36, %41 : vector<256x256xf32>
    %c1_34 = arith.constant 1 : index
    %c3_35 = arith.constant 3 : index
    %43 = memref.load %arg2[%c1_34, %c3_35] : memref<2x4xf32, #tpu.memory_space<smem>>
    %c3_36 = arith.constant 3 : index
    %c0_37 = arith.constant 0 : index
    %c0_38 = arith.constant 0 : index
    %44 = vector.load %arg3[%c3_36, %c0_37, %c0_38] : memref<4x256x256xf32, #tpu.memory_space<vmem>>, vector<1x256x256xf32>
    %45 = vector.shape_cast %44 : vector<1x256x256xf32> to vector<256x256xf32>
    %46 = vector.broadcast %43 : f32 to vector<256x256xf32>
    %47 = arith.mulf %46, %45 : vector<256x256xf32>
    %48 = arith.addf %42, %47 : vector<256x256xf32>
    %c1_39 = arith.constant 1 : index
    %c0_40 = arith.constant 0 : index
    %c0_41 = arith.constant 0 : index
    %49 = vector.load %arg4[%c1_39, %c0_40, %c0_41] : memref<2x256x256xf32, #tpu.memory_space<vmem>>, vector<1x256x256xf32>
    %50 = vector.shape_cast %49 : vector<1x256x256xf32> to vector<256x256xf32>
    %51 = vector.shape_cast %48 : vector<256x256xf32> to vector<1x256x256xf32>
    tpu.vector_store %arg4[%c1_39, %c0_40, %c0_41], %51 {strides = array<i32>} : memref<2x256x256xf32, #tpu.memory_space<vmem>>, vector<1x256x256xf32>,
    return
  }
  func.func @transform_0(%arg0: i32, %arg1: i32) -> (i32, i32) {
    %c0_i32 = arith.constant 0 : i32
    %c0_i32_0 = arith.constant 0 : i32
    %c0_i32_1 = arith.constant 0 : i32
    return %c0_i32, %c0_i32_0 : i32, i32
  }
  func.func @transform_1(%arg0: i32, %arg1: i32) -> (i32, i32, i32) {
    %c0_i32 = arith.constant 0 : i32
    %c0_i32_0 = arith.constant 0 : i32
    return %c0_i32, %arg0, %arg1 : i32, i32, i32
  }
  func.func @transform_2(%arg0: i32, %arg1: i32) -> (i32, i32, i32) {
    %c0_i32 = arith.constant 0 : i32
    %c0_i32_0 = arith.constant 0 : i32
    return %c0_i32, %arg0, %arg1 : i32, i32, i32
  }
}

</mosaic_0001>

<llo_original>
// kernel: tpu_custom_call.1
$region0: #{tpu_custom_call.1}
  #allocation0 [shape = 'u32[]', space=smem, size = 0x4, offset = 0x4, fixed_abs, tag = 'smem constant byte address 0x4 - core index']
  #allocation1 [shape = 'u32[144,128]{1,0:T(1,128)}', space=vmem, size = 0x12000, scoped, tag = 'internal scratch']
  %s0 = inlined_call_operand.hbm [shape: f32[2,4], index: 0, kind: input, shape index: {}]
  %s1 = inlined_call_operand.hbm [shape: f32[4,256,256], index: 1, kind: input, shape index: {}]
  %s2 = inlined_call_operand.hbm [shape: f32[2,256,256], index: 2, kind: output, shape index: {}]
  %s3 = sld [smem:[#allocation0]]
  $region26: #{tpu_custom_call.1} parent=0
    _
  %s5 = ssub.s32 1, %s3
  %s6 = scalar_select 0, %s5, %s3
  $region1: #{tpu_custom_call.1} parent=0
    #allocation2 [shape = 'u8[1024]{0}', space=smem, size = 0x400, scoped, tag = 'input window, operand 0, single buffered']
    #allocation3 [shape = 's32[1]{0}', space=sflag, size = 0x4, scoped, tag = 'scoped memory for tpu_custom_call.1']
    #allocation4 [shape = 's32[1]{0}', space=sflag, size = 0x4, scoped, tag = 'scoped memory for tpu_custom_call.1']
    #allocation5 [shape = 's32[1]{0}', space=sflag, size = 0x4, scoped, tag = 'scoped memory for tpu_custom_call.1']
    #allocation6 [shape = 'u8[1048576]{0}', space=vmem, size = 0x100000, scoped, tag = 'input window, operand 1, single buffered']
    #allocation7 [shape = 'u8[524288]{0}', space=vmem, size = 0x80000, scoped, tag = 'output window, operand 0, single buffered']
    %7 = vsyncpa [#allocation5], 0
    %8 = vsyncpa [#allocation3], 0
    %9 = vsyncpa [#allocation4], 0
    // Predicated region
    $region2: #{tpu_custom_call.1} parent=1 // pred_check
      _
    $region3: #{tpu_custom_call.1} parent=1 // pred_check_branch
      %11 = sbr.rel (0) target = $region5
    $region4: #{tpu_custom_call.1} parent=1 // pred_region
      %s13 = ssub.s32 32, 32
      %14 = vsyncadd [#allocation5], %s13
      %17 = dma.hbm_to_smem %s0, 32, [#allocation2], [#allocation5]
    $region5: #{tpu_custom_call.1} parent=1 // pred_fallthru
      _
    // Predicated region
    $region6: #{tpu_custom_call.1} parent=1 // pred_check
      _
    $region7: #{tpu_custom_call.1} parent=1 // pred_check_branch
      %19 = sbr.rel (0) target = $region9
    $region8: #{tpu_custom_call.1} parent=1 // pred_region
      %s21 = ssub.s32 32768, 32768
      %22 = vsyncadd [#allocation3], %s21
      %s23 = sshll.u32 [#allocation6], 4
      %s24 = int_to_ptr.vmem [resolvable:$true] %s23
      %29 = dma.hbm_to_vmem [thread:$0]  %s1, 32768, %s24, [#allocation3], 256, 256, 16
    $region9: #{tpu_custom_call.1} parent=1 // pred_fallthru
      _
    // Predicated region
    $region10: #{tpu_custom_call.1} parent=1 // pred_check
      _
    $region11: #{tpu_custom_call.1} parent=1 // pred_check_branch
      %31 = sbr.rel (0) target = $region13
    $region12: #{tpu_custom_call.1} parent=1 // pred_region
      %32 = dma.done [#allocation5], 32
    $region13: #{tpu_custom_call.1} parent=1 // pred_fallthru
      _
    // Predicated region
    $region14: #{tpu_custom_call.1} parent=1 // pred_check
      _
    $region15: #{tpu_custom_call.1} parent=1 // pred_check_branch
      %34 = sbr.rel (0) target = $region17
    $region16: #{tpu_custom_call.1} parent=1 // pred_region
      %35 = dma.done [#allocation3], 32768
    $region17: #{tpu_custom_call.1} parent=1 // pred_fallthru
      _
    %36 = sfence
    %s37 = sld [smem:[#allocation2]]
    %v38 = vld [vmem:[#allocation6] sm:$0xff]
    %v39 = vld [vmem:[#allocation6 + $0x8] sm:$0xff]
    %v40 = vld [vmem:[#allocation6 + $0x10] sm:$0xff]
    %v41 = vld [vmem:[#allocation6 + $0x18] sm:$0xff]
    %v42 = vld [vmem:[#allocation6 + $0x20] sm:$0xff]
    %v43 = vld [vmem:[#allocation6 + $0x28] sm:$0xff]
    %v44 = vld [vmem:[#allocation6 + $0x30] sm:$0xff]
    %v45 = vld [vmem:[#allocation6 + $0x38] sm:$0xff]
    %v46 = vld [vmem:[#allocation6 + $0x40] sm:$0xff]
    %v47 = vld [vmem:[#allocation6 + $0x48] sm:$0xff]
    %v48 = vld [vmem:[#allocation6 + $0x50] sm:$0xff]
    %v49 = vld [vmem:[#allocation6 + $0x58] sm:$0xff]
    %v50 = vld [vmem:[#allocation6 + $0x60] sm:$0xff]
    %v51 = vld [vmem:[#allocation6 + $0x68] sm:$0xff]
    %v52 = vld [vmem:[#allocation6 + $0x70] sm:$0xff]
    %v53 = vld [vmem:[#allocation6 + $0x78] sm:$0xff]
    %v54 = vld [vmem:[#allocation6 + $0x80] sm:$0xff]
    %v55 = vld [vmem:[#allocation6 + $0x88] sm:$0xff]
    %v56 = vld [vmem:[#allocation6 + $0x90] sm:$0xff]
    %v57 = vld [vmem:[#allocation6 + $0x98] sm:$0xff]
    %v58 = vld [vmem:[#allocation6 + $0xa0] sm:$0xff]
    %v59 = vld [vmem:[#allocation6 + $0xa8] sm:$0xff]
    %v60 = vld [vmem:[#allocation6 + $0xb0] sm:$0xff]
    %v61 = vld [vmem:[#allocation6 + $0xb8] sm:$0xff]
    %v62 = vld [vmem:[#allocation6 + $0xc0] sm:$0xff]
    %v63 = vld [vmem:[#allocation6 + $0xc8] sm:$0xff]
    %v64 = vld [vmem:[#allocation6 + $0xd0] sm:$0xff]
    %v65 = vld [vmem:[#allocation6 + $0xd8] sm:$0xff]
    %v66 = vld [vmem:[#allocation6 + $0xe0] sm:$0xff]
    %v67 = vld [vmem:[#allocation6 + $0xe8] sm:$0xff]
    %v68 = vld [vmem:[#allocation6 + $0xf0] sm:$0xff]
    %v69 = vld [vmem:[#allocation6 + $0xf8] sm:$0xff]
    %v70 = vld [vmem:[#allocation6 + $0x100] sm:$0xff]
    %v71 = vld [vmem:[#allocation6 + $0x108] sm:$0xff]
    %v72 = vld [vmem:[#allocation6 + $0x110] sm:$0xff]
    %v73 = vld [vmem:[#allocation6 + $0x118] sm:$0xff]
    %v74 = vld [vmem:[#allocation6 + $0x120] sm:$0xff]
    %v75 = vld [vmem:[#allocation6 + $0x128] sm:$0xff]
    %v76 = vld [vmem:[#allocation6 + $0x130] sm:$0xff]
    %v77 = vld [vmem:[#allocation6 + $0x138] sm:$0xff]
    %v78 = vld [vmem:[#allocation6 + $0x140] sm:$0xff]
    %v79 = vld [vmem:[#allocation6 + $0x148] sm:$0xff]
    %v80 = vld [vmem:[#allocation6 + $0x150] sm:$0xff]
    %v81 = vld [vmem:[#allocation6 + $0x158] sm:$0xff]
    %v82 = vld [vmem:[#allocation6 + $0x160] sm:$0xff]
    %v83 = vld [vmem:[#allocation6 + $0x168] sm:$0xff]
    %v84 = vld [vmem:[#allocation6 + $0x170] sm:$0xff]
    %v85 = vld [vmem:[#allocation6 + $0x178] sm:$0xff]
    %v86 = vld [vmem:[#allocation6 + $0x180] sm:$0xff]
    %v87 = vld [vmem:[#allocation6 + $0x188] sm:$0xff]
    %v88 = vld [vmem:[#allocation6 + $0x190] sm:$0xff]
    %v89 = vld [vmem:[#allocation6 + $0x198] sm:$0xff]
    %v90 = vld [vmem:[#allocation6 + $0x1a0] sm:$0xff]
    %v91 = vld [vmem:[#allocation6 + $0x1a8] sm:$0xff]
    %v92 = vld [vmem:[#allocation6 + $0x1b0] sm:$0xff]
    %v93 = vld [vmem:[#allocation6 + $0x1b8] sm:$0xff]
    %v94 = vld [vmem:[#allocation6 + $0x1c0] sm:$0xff]
    %v95 = vld [vmem:[#allocation6 + $0x1c8] sm:$0xff]
    %v96 = vld [vmem:[#allocation6 + $0x1d0] sm:$0xff]
    %v97 = vld [vmem:[#allocation6 + $0x1d8] sm:$0xff]
    %v98 = vld [vmem:[#allocation6 + $0x1e0] sm:$0xff]
    %v99 = vld [vmem:[#allocation6 + $0x1e8] sm:$0xff]
    %v100 = vld [vmem:[#allocation6 + $0x1f0] sm:$0xff]
    %v101 = vld [vmem:[#allocation6 + $0x1f8] sm:$0xff]
    %v102 = vstv %s37
    %v103 = vmul.f32 %v102, %v38
    %v104 = vmul.f32 %v102, %v39
    %v105 = vmul.f32 %v102, %v40
    %v106 = vmul.f32 %v102, %v41
    %v107 = vmul.f32 %v102, %v42
    %v108 = vmul.f32 %v102, %v43
    %v109 = vmul.f32 %v102, %v44
    %v110 = vmul.f32 %v102, %v45
    %v111 = vmul.f32 %v102, %v46
    %v112 = vmul.f32 %v102, %v47
    %v113 = vmul.f32 %v102, %v48
    %v114 = vmul.f32 %v102, %v49
    %v115 = vmul.f32 %v102, %v50
    %v116 = vmul.f32 %v102, %v51
    %v117 = vmul.f32 %v102, %v52
    %v118 = vmul.f32 %v102, %v53
    %v119 = vmul.f32 %v102, %v54
    %v120 = vmul.f32 %v102, %v55
    %v121 = vmul.f32 %v102, %v56
    %v122 = vmul.f32 %v102, %v57
    %v123 = vmul.f32 %v102, %v58
    %v124 = vmul.f32 %v102, %v59
    %v125 = vmul.f32 %v102, %v60
    %v126 = vmul.f32 %v102, %v61
    %v127 = vmul.f32 %v102, %v62
    %v128 = vmul.f32 %v102, %v63
    %v129 = vmul.f32 %v102, %v64
    %v130 = vmul.f32 %v102, %v65
    %v131 = vmul.f32 %v102, %v66
    %v132 = vmul.f32 %v102, %v67
    %v133 = vmul.f32 %v102, %v68
    %v134 = vmul.f32 %v102, %v69
    %v135 = vmul.f32 %v102, %v70
    %v136 = vmul.f32 %v102, %v71
    %v137 = vmul.f32 %v102, %v72
    %v138 = vmul.f32 %v102, %v73
    %v139 = vmul.f32 %v102, %v74
    %v140 = vmul.f32 %v102, %v75
    %v141 = vmul.f32 %v102, %v76
    %v142 = vmul.f32 %v102, %v77
    %v143 = vmul.f32 %v102, %v78
    %v144 = vmul.f32 %v102, %v79
    %v145 = vmul.f32 %v102, %v80
    %v146 = vmul.f32 %v102, %v81
    %v147 = vmul.f32 %v102, %v82
    %v148 = vmul.f32 %v102, %v83
    %v149 = vmul.f32 %v102, %v84
    %v150 = vmul.f32 %v102, %v85
    %v151 = vmul.f32 %v102, %v86
    %v152 = vmul.f32 %v102, %v87
    %v153 = vmul.f32 %v102, %v88
    %v154 = vmul.f32 %v102, %v89
    %v155 = vmul.f32 %v102, %v90
    %v156 = vmul.f32 %v102, %v91
    %v157 = vmul.f32 %v102, %v92
    %v158 = vmul.f32 %v102, %v93
    %v159 = vmul.f32 %v102, %v94
    %v160 = vmul.f32 %v102, %v95
    %v161 = vmul.f32 %v102, %v96
    %v162 = vmul.f32 %v102, %v97
    %v163 = vmul.f32 %v102, %v98
    %v164 = vmul.f32 %v102, %v99
    %v165 = vmul.f32 %v102, %v100
    %v166 = vmul.f32 %v102, %v101
    %s167 = sld [smem:[#allocation2 + $0x1]]
    %s168 = scalar_lea.vmem [#allocation6], 512
    %v169 = vld [vmem:[%s168] sm:$0xff]
    %v170 = vld [vmem:[%s168 + $0x8] sm:$0xff]
    %v171 = vld [vmem:[%s168 + $0x10] sm:$0xff]
    %v172 = vld [vmem:[%s168 + $0x18] sm:$0xff]
    %v173 = vld [vmem:[%s168 + $0x20] sm:$0xff]
    %v174 = vld [vmem:[%s168 + $0x28] sm:$0xff]
    %v175 = vld [vmem:[%s168 + $0x30] sm:$0xff]
    %v176 = vld [vmem:[%s168 + $0x38] sm:$0xff]
    %v177 = vld [vmem:[%s168 + $0x40] sm:$0xff]
    %v178 = vld [vmem:[%s168 + $0x48] sm:$0xff]
    %v179 = vld [vmem:[%s168 + $0x50] sm:$0xff]
    %v180 = vld [vmem:[%s168 + $0x58] sm:$0xff]
    %v181 = vld [vmem:[%s168 + $0x60] sm:$0xff]
    %v182 = vld [vmem:[%s168 + $0x68] sm:$0xff]
    %v183 = vld [vmem:[%s168 + $0x70] sm:$0xff]
    %v184 = vld [vmem:[%s168 + $0x78] sm:$0xff]
    %v185 = vld [vmem:[%s168 + $0x80] sm:$0xff]
    %v186 = vld [vmem:[%s168 + $0x88] sm:$0xff]
    %v187 = vld [vmem:[%s168 + $0x90] sm:$0xff]
    %v188 = vld [vmem:[%s168 + $0x98] sm:$0xff]
    %v189 = vld [vmem:[%s168 + $0xa0] sm:$0xff]
    %v190 = vld [vmem:[%s168 + $0xa8] sm:$0xff]
    %v191 = vld [vmem:[%s168 + $0xb0] sm:$0xff]
    %v192 = vld [vmem:[%s168 + $0xb8] sm:$0xff]
    %v193 = vld [vmem:[%s168 + $0xc0] sm:$0xff]
    %v194 = vld [vmem:[%s168 + $0xc8] sm:$0xff]
    %v195 = vld [vmem:[%s168 + $0xd0] sm:$0xff]
    %v196 = vld [vmem:[%s168 + $0xd8] sm:$0xff]
    %v197 = vld [vmem:[%s168 + $0xe0] sm:$0xff]
    %v198 = vld [vmem:[%s168 + $0xe8] sm:$0xff]
    %v199 = vld [vmem:[%s168 + $0xf0] sm:$0xff]
    %v200 = vld [vmem:[%s168 + $0xf8] sm:$0xff]
    %v201 = vld [vmem:[%s168 + $0x100] sm:$0xff]
    %v202 = vld [vmem:[%s168 + $0x108] sm:$0xff]
    %v203 = vld [vmem:[%s168 + $0x110] sm:$0xff]
    %v204 = vld [vmem:[%s168 + $0x118] sm:$0xff]
    %v205 = vld [vmem:[%s168 + $0x120] sm:$0xff]
    %v206 = vld [vmem:[%s168 + $0x128] sm:$0xff]
    %v207 = vld [vmem:[%s168 + $0x130] sm:$0xff]
    %v208 = vld [vmem:[%s168 + $0x138] sm:$0xff]
    %v209 = vld [vmem:[%s168 + $0x140] sm:$0xff]
    %v210 = vld [vmem:[%s168 + $0x148] sm:$0xff]
    %v211 = vld [vmem:[%s168 + $0x150] sm:$0xff]
    %v212 = vld [vmem:[%s168 + $0x158] sm:$0xff]
    %v213 = vld [vmem:[%s168 + $0x160] sm:$0xff]
    %v214 = vld [vmem:[%s168 + $0x168] sm:$0xff]
    %v215 = vld [vmem:[%s168 + $0x170] sm:$0xff]
    %v216 = vld [vmem:[%s168 + $0x178] sm:$0xff]
    %v217 = vld [vmem:[%s168 + $0x180] sm:$0xff]
    %v218 = vld [vmem:[%s168 + $0x188] sm:$0xff]
    %v219 = vld [vmem:[%s168 + $0x190] sm:$0xff]
    %v220 = vld [vmem:[%s168 + $0x198] sm:$0xff]
    %v221 = vld [vmem:[%s168 + $0x1a0] sm:$0xff]
    %v222 = vld [vmem:[%s168 + $0x1a8] sm:$0xff]
    %v223 = vld [vmem:[%s168 + $0x1b0] sm:$0xff]
    %v224 = vld [vmem:[%s168 + $0x1b8] sm:$0xff]
    %v225 = vld [vmem:[%s168 + $0x1c0] sm:$0xff]
    %v226 = vld [vmem:[%s168 + $0x1c8] sm:$0xff]
    %v227 = vld [vmem:[%s168 + $0x1d0] sm:$0xff]
    %v228 = vld [vmem:[%s168 + $0x1d8] sm:$0xff]
    %v229 = vld [vmem:[%s168 + $0x1e0] sm:$0xff]
    %v230 = vld [vmem:[%s168 + $0x1e8] sm:$0xff]
    %v231 = vld [vmem:[%s168 + $0x1f0] sm:$0xff]
    %v232 = vld [vmem:[%s168 + $0x1f8] sm:$0xff]
    %v233 = vstv %s167
    %v234 = vmul.f32 %v233, %v169
    %v235 = vmul.f32 %v233, %v170
    %v236 = vmul.f32 %v233, %v171
    %v237 = vmul.f32 %v233, %v172
    %v238 = vmul.f32 %v233, %v173
    %v239 = vmul.f32 %v233, %v174
    %v240 = vmul.f32 %v233, %v175
    %v241 = vmul.f32 %v233, %v176
    %v242 = vmul.f32 %v233, %v177
    %v243 = vmul.f32 %v233, %v178
    %v244 = vmul.f32 %v233, %v179
    %v245 = vmul.f32 %v233, %v180
    %v246 = vmul.f32 %v233, %v181
    %v247 = vmul.f32 %v233, %v182
    %v248 = vmul.f32 %v233, %v183
    %v249 = vmul.f32 %v233, %v184
    %v250 = vmul.f32 %v233, %v185
    %v251 = vmul.f32 %v233, %v186
    %v252 = vmul.f32 %v233, %v187
    %v253 = vmul.f32 %v233, %v188
    %v254 = vmul.f32 %v233, %v189
    %v255 = vmul.f32 %v233, %v190
    %v256 = vmul.f32 %v233, %v191
    %v257 = vmul.f32 %v233, %v192
    %v258 = vmul.f32 %v233, %v193
    %v259 = vmul.f32 %v233, %v194
    %v260 = vmul.f32 %v233, %v195
    %v261 = vmul.f32 %v233, %v196
    %v262 = vmul.f32 %v233, %v197
    %v263 = vmul.f32 %v233, %v198
    %v264 = vmul.f32 %v233, %v199
    %v265 = vmul.f32 %v233, %v200
    %v266 = vmul.f32 %v233, %v201
    %v267 = vmul.f32 %v233, %v202
    %v268 = vmul.f32 %v233, %v203
    %v269 = vmul.f32 %v233, %v204
    %v270 = vmul.f32 %v233, %v205
    %v271 = vmul.f32 %v233, %v206
    %v272 = vmul.f32 %v233, %v207
    %v273 = vmul.f32 %v233, %v208
    %v274 = vmul.f32 %v233, %v209
    %v275 = vmul.f32 %v233, %v210
    %v276 = vmul.f32 %v233, %v211
    %v277 = vmul.f32 %v233, %v212
    %v278 = vmul.f32 %v233, %v213
    %v279 = vmul.f32 %v233, %v214
    %v280 = vmul.f32 %v233, %v215
    %v281 = vmul.f32 %v233, %v216
    %v282 = vmul.f32 %v233, %v217
    %v283 = vmul.f32 %v233, %v218
    %v284 = vmul.f32 %v233, %v219
    %v285 = vmul.f32 %v233, %v220
    %v286 = vmul.f32 %v233, %v221
    %v287 = vmul.f32 %v233, %v222
    %v288 = vmul.f32 %v233, %v223
    %v289 = vmul.f32 %v233, %v224
    %v290 = vmul.f32 %v233, %v225
    %v291 = vmul.f32 %v233, %v226
    %v292 = vmul.f32 %v233, %v227
    %v293 = vmul.f32 %v233, %v228
    %v294 = vmul.f32 %v233, %v229
    %v295 = vmul.f32 %v233, %v230
    %v296 = vmul.f32 %v233, %v231
    %v297 = vmul.f32 %v233, %v232
    %v298 = vadd.f32 %v103, %v234
    %v299 = vadd.f32 %v104, %v235
    %v300 = vadd.f32 %v105, %v236
    %v301 = vadd.f32 %v106, %v237
    %v302 = vadd.f32 %v107, %v238
    %v303 = vadd.f32 %v108, %v239
    %v304 = vadd.f32 %v109, %v240
    %v305 = vadd.f32 %v110, %v241
    %v306 = vadd.f32 %v111, %v242
    %v307 = vadd.f32 %v112, %v243
    %v308 = vadd.f32 %v113, %v244
    %v309 = vadd.f32 %v114, %v245
    %v310 = vadd.f32 %v115, %v246
    %v311 = vadd.f32 %v116, %v247
    %v312 = vadd.f32 %v117, %v248
    %v313 = vadd.f32 %v118, %v249
    %v314 = vadd.f32 %v119, %v250
    %v315 = vadd.f32 %v120, %v251
    %v316 = vadd.f32 %v121, %v252
    %v317 = vadd.f32 %v122, %v253
    %v318 = vadd.f32 %v123, %v254
    %v319 = vadd.f32 %v124, %v255
    %v320 = vadd.f32 %v125, %v256
    %v321 = vadd.f32 %v126, %v257
    %v322 = vadd.f32 %v127, %v258
    %v323 = vadd.f32 %v128, %v259
    %v324 = vadd.f32 %v129, %v260
    %v325 = vadd.f32 %v130, %v261
    %v326 = vadd.f32 %v131, %v262
    %v327 = vadd.f32 %v132, %v263
    %v328 = vadd.f32 %v133, %v264
    %v329 = vadd.f32 %v134, %v265
    %v330 = vadd.f32 %v135, %v266
    %v331 = vadd.f32 %v136, %v267
    %v332 = vadd.f32 %v137, %v268
    %v333 = vadd.f32 %v138, %v269
    %v334 = vadd.f32 %v139, %v270
    %v335 = vadd.f32 %v140, %v271
    %v336 = vadd.f32 %v141, %v272
    %v337 = vadd.f32 %v142, %v273
    %v338 = vadd.f32 %v143, %v274
    %v339 = vadd.f32 %v144, %v275
    %v340 = vadd.f32 %v145, %v276
    %v341 = vadd.f32 %v146, %v277
    %v342 = vadd.f32 %v147, %v278
    %v343 = vadd.f32 %v148, %v279
    %v344 = vadd.f32 %v149, %v280
    %v345 = vadd.f32 %v150, %v281
    %v346 = vadd.f32 %v151, %v282
    %v347 = vadd.f32 %v152, %v283
    %v348 = vadd.f32 %v153, %v284
    %v349 = vadd.f32 %v154, %v285
    %v350 = vadd.f32 %v155, %v286
    %v351 = vadd.f32 %v156, %v287
    %v352 = vadd.f32 %v157, %v288
    %v353 = vadd.f32 %v158, %v289
    %v354 = vadd.f32 %v159, %v290
    %v355 = vadd.f32 %v160, %v291
    %v356 = vadd.f32 %v161, %v292
    %v357 = vadd.f32 %v162, %v293
    %v358 = vadd.f32 %v163, %v294
    %v359 = vadd.f32 %v164, %v295
    %v360 = vadd.f32 %v165, %v296
    %v361 = vadd.f32 %v166, %v297
    %s362 = sld [smem:[#allocation2 + $0x2]]
    %s363 = scalar_lea.vmem [#allocation6], 1024
    %v364 = vld [vmem:[%s363] sm:$0xff]
    %v365 = vld [vmem:[%s363 + $0x8] sm:$0xff]
    %v366 = vld [vmem:[%s363 + $0x10] sm:$0xff]
    %v367 = vld [vmem:[%s363 + $0x18] sm:$0xff]
    %v368 = vld [vmem:[%s363 + $0x20] sm:$0xff]
    %v369 = vld [vmem:[%s363 + $0x28] sm:$0xff]
    %v370 = vld [vmem:[%s363 + $0x30] sm:$0xff]
    %v371 = vld [vmem:[%s363 + $0x38] sm:$0xff]
    %v372 = vld [vmem:[%s363 + $0x40] sm:$0xff]
    %v373 = vld [vmem:[%s363 + $0x48] sm:$0xff]
    %v374 = vld [vmem:[%s363 + $0x50] sm:$0xff]
    %v375 = vld [vmem:[%s363 + $0x58] sm:$0xff]
    %v376 = vld [vmem:[%s363 + $0x60] sm:$0xff]
    %v377 = vld [vmem:[%s363 + $0x68] sm:$0xff]
    %v378 = vld [vmem:[%s363 + $0x70] sm:$0xff]
    %v379 = vld [vmem:[%s363 + $0x78] sm:$0xff]
    %v380 = vld [vmem:[%s363 + $0x80] sm:$0xff]
    %v381 = vld [vmem:[%s363 + $0x88] sm:$0xff]
    %v382 = vld [vmem:[%s363 + $0x90] sm:$0xff]
    %v383 = vld [vmem:[%s363 + $0x98] sm:$0xff]
    %v384 = vld [vmem:[%s363 + $0xa0] sm:$0xff]
    %v385 = vld [vmem:[%s363 + $0xa8] sm:$0xff]
    %v386 = vld [vmem:[%s363 + $0xb0] sm:$0xff]
    %v387 = vld [vmem:[%s363 + $0xb8] sm:$0xff]
    %v388 = vld [vmem:[%s363 + $0xc0] sm:$0xff]
    %v389 = vld [vmem:[%s363 + $0xc8] sm:$0xff]
    %v390 = vld [vmem:[%s363 + $0xd0] sm:$0xff]
    %v391 = vld [vmem:[%s363 + $0xd8] sm:$0xff]
    %v392 = vld [vmem:[%s363 + $0xe0] sm:$0xff]
    %v393 = vld [vmem:[%s363 + $0xe8] sm:$0xff]
    %v394 = vld [vmem:[%s363 + $0xf0] sm:$0xff]
    %v395 = vld [vmem:[%s363 + $0xf8] sm:$0xff]
    %v396 = vld [vmem:[%s363 + $0x100] sm:$0xff]
    %v397 = vld [vmem:[%s363 + $0x108] sm:$0xff]
    %v398 = vld [vmem:[%s363 + $0x110] sm:$0xff]
    %v399 = vld [vmem:[%s363 + $0x118] sm:$0xff]
    %v400 = vld [vmem:[%s363 + $0x120] sm:$0xff]
    %v401 = vld [vmem:[%s363 + $0x128] sm:$0xff]
    %v402 = vld [vmem:[%s363 + $0x130] sm:$0xff]
    %v403 = vld [vmem:[%s363 + $0x138] sm:$0xff]
    %v404 = vld [vmem:[%s363 + $0x140] sm:$0xff]
    %v405 = vld [vmem:[%s363 + $0x148] sm:$0xff]
    %v406 = vld [vmem:[%s363 + $0x150] sm:$0xff]
    %v407 = vld [vmem:[%s363 + $0x158] sm:$0xff]
    %v408 = vld [vmem:[%s363 + $0x160] sm:$0xff]
    %v409 = vld [vmem:[%s363 + $0x168] sm:$0xff]
    %v410 = vld [vmem:[%s363 + $0x170] sm:$0xff]
    %v411 = vld [vmem:[%s363 + $0x178] sm:$0xff]
    %v412 = vld [vmem:[%s363 + $0x180] sm:$0xff]
    %v413 = vld [vmem:[%s363 + $0x188] sm:$0xff]
    %v414 = vld [vmem:[%s363 + $0x190] sm:$0xff]
    %v415 = vld [vmem:[%s363 + $0x198] sm:$0xff]
    %v416 = vld [vmem:[%s363 + $0x1a0] sm:$0xff]
    %v417 = vld [vmem:[%s363 + $0x1a8] sm:$0xff]
    %v418 = vld [vmem:[%s363 + $0x1b0] sm:$0xff]
    %v419 = vld [vmem:[%s363 + $0x1b8] sm:$0xff]
    %v420 = vld [vmem:[%s363 + $0x1c0] sm:$0xff]
    %v421 = vld [vmem:[%s363 + $0x1c8] sm:$0xff]
    %v422 = vld [vmem:[%s363 + $0x1d0] sm:$0xff]
    %v423 = vld [vmem:[%s363 + $0x1d8] sm:$0xff]
    %v424 = vld [vmem:[%s363 + $0x1e0] sm:$0xff]
    %v425 = vld [vmem:[%s363 + $0x1e8] sm:$0xff]
    %v426 = vld [vmem:[%s363 + $0x1f0] sm:$0xff]
    %v427 = vld [vmem:[%s363 + $0x1f8] sm:$0xff]
    %v428 = vstv %s362
    %v429 = vmul.f32 %v428, %v364
    %v430 = vmul.f32 %v428, %v365
    %v431 = vmul.f32 %v428, %v366
    %v432 = vmul.f32 %v428, %v367
    %v433 = vmul.f32 %v428, %v368
    %v434 = vmul.f32 %v428, %v369
    %v435 = vmul.f32 %v428, %v370
    %v436 = vmul.f32 %v428, %v371
    %v437 = vmul.f32 %v428, %v372
    %v438 = vmul.f32 %v428, %v373
    %v439 = vmul.f32 %v428, %v374
    %v440 = vmul.f32 %v428, %v375
    %v441 = vmul.f32 %v428, %v376
    %v442 = vmul.f32 %v428, %v377
    %v443 = vmul.f32 %v428, %v378
    %v444 = vmul.f32 %v428, %v379
    %v445 = vmul.f32 %v428, %v380
    %v446 = vmul.f32 %v428, %v381
    %v447 = vmul.f32 %v428, %v382
    %v448 = vmul.f32 %v428, %v383
    %v449 = vmul.f32 %v428, %v384
    %v450 = vmul.f32 %v428, %v385
    %v451 = vmul.f32 %v428, %v386
    %v452 = vmul.f32 %v428, %v387
    %v453 = vmul.f32 %v428, %v388
    %v454 = vmul.f32 %v428, %v389
    %v455 = vmul.f32 %v428, %v390
    %v456 = vmul.f32 %v428, %v391
    %v457 = vmul.f32 %v428, %v392
    %v458 = vmul.f32 %v428, %v393
    %v459 = vmul.f32 %v428, %v394
    %v460 = vmul.f32 %v428, %v395
    %v461 = vmul.f32 %v428, %v396
    %v462 = vmul.f32 %v428, %v397
    %v463 = vmul.f32 %v428, %v398
    %v464 = vmul.f32 %v428, %v399
    %v465 = vmul.f32 %v428, %v400
    %v466 = vmul.f32 %v428, %v401
    %v467 = vmul.f32 %v428, %v402
    %v468 = vmul.f32 %v428, %v403
    %v469 = vmul.f32 %v428, %v404
    %v470 = vmul.f32 %v428, %v405
    %v471 = vmul.f32 %v428, %v406
    %v472 = vmul.f32 %v428, %v407
    %v473 = vmul.f32 %v428, %v408
    %v474 = vmul.f32 %v428, %v409
    %v475 = vmul.f32 %v428, %v410
    %v476 = vmul.f32 %v428, %v411
    %v477 = vmul.f32 %v428, %v412
    %v478 = vmul.f32 %v428, %v413
    %v479 = vmul.f32 %v428, %v414
    %v480 = vmul.f32 %v428, %v415
    %v481 = vmul.f32 %v428, %v416
    %v482 = vmul.f32 %v428, %v417
    %v483 = vmul.f32 %v428, %v418
    %v484 = vmul.f32 %v428, %v419
    %v485 = vmul.f32 %v428, %v420
    %v486 = vmul.f32 %v428, %v421
    %v487 = vmul.f32 %v428, %v422
    %v488 = vmul.f32 %v428, %v423
    %v489 = vmul.f32 %v428, %v424
    %v490 = vmul.f32 %v428, %v425
    %v491 = vmul.f32 %v428, %v426
    %v492 = vmul.f32 %v428, %v427
    %v493 = vadd.f32 %v298, %v429
    %v494 = vadd.f32 %v299, %v430
    %v495 = vadd.f32 %v300, %v431
    %v496 = vadd.f32 %v301, %v432
    %v497 = vadd.f32 %v302, %v433
    %v498 = vadd.f32 %v303, %v434
    %v499 = vadd.f32 %v304, %v435
    %v500 = vadd.f32 %v305, %v436
    %v501 = vadd.f32 %v306, %v437
    %v502 = vadd.f32 %v307, %v438
    %v503 = vadd.f32 %v308, %v439
    %v504 = vadd.f32 %v309, %v440
    %v505 = vadd.f32 %v310, %v441
    %v506 = vadd.f32 %v311, %v442
    %v507 = vadd.f32 %v312, %v443
    %v508 = vadd.f32 %v313, %v444
    %v509 = vadd.f32 %v314, %v445
    %v510 = vadd.f32 %v315, %v446
    %v511 = vadd.f32 %v316, %v447
    %v512 = vadd.f32 %v317, %v448
    %v513 = vadd.f32 %v318, %v449
    %v514 = vadd.f32 %v319, %v450
    %v515 = vadd.f32 %v320, %v451
    %v516 = vadd.f32 %v321, %v452
    %v517 = vadd.f32 %v322, %v453
    %v518 = vadd.f32 %v323, %v454
    %v519 = vadd.f32 %v324, %v455
    %v520 = vadd.f32 %v325, %v456
    %v521 = vadd.f32 %v326, %v457
    %v522 = vadd.f32 %v327, %v458
    %v523 = vadd.f32 %v328, %v459
    %v524 = vadd.f32 %v329, %v460
    %v525 = vadd.f32 %v330, %v461
    %v526 = vadd.f32 %v331, %v462
    %v527 = vadd.f32 %v332, %v463
    %v528 = vadd.f32 %v333, %v464
    %v529 = vadd.f32 %v334, %v465
    %v530 = vadd.f32 %v335, %v466
    %v531 = vadd.f32 %v336, %v467
    %v532 = vadd.f32 %v337, %v468
    %v533 = vadd.f32 %v338, %v469
    %v534 = vadd.f32 %v339, %v470
    %v535 = vadd.f32 %v340, %v471
    %v536 = vadd.f32 %v341, %v472
    %v537 = vadd.f32 %v342, %v473
    %v538 = vadd.f32 %v343, %v474
    %v539 = vadd.f32 %v344, %v475
    %v540 = vadd.f32 %v345, %v476
    %v541 = vadd.f32 %v346, %v477
    %v542 = vadd.f32 %v347, %v478
    %v543 = vadd.f32 %v348, %v479
    %v544 = vadd.f32 %v349, %v480
    %v545 = vadd.f32 %v350, %v481
    %v546 = vadd.f32 %v351, %v482
    %v547 = vadd.f32 %v352, %v483
    %v548 = vadd.f32 %v353, %v484
    %v549 = vadd.f32 %v354, %v485
    %v550 = vadd.f32 %v355, %v486
    %v551 = vadd.f32 %v356, %v487
    %v552 = vadd.f32 %v357, %v488
    %v553 = vadd.f32 %v358, %v489
    %v554 = vadd.f32 %v359, %v490
    %v555 = vadd.f32 %v360, %v491
    %v556 = vadd.f32 %v361, %v492
    %s557 = sld [smem:[#allocation2 + $0x3]]
    %s558 = scalar_lea.vmem [#allocation6], 1536
    %v559 = vld [vmem:[%s558] sm:$0xff]
    %v560 = vld [vmem:[%s558 + $0x8] sm:$0xff]
    %v561 = vld [vmem:[%s558 + $0x10] sm:$0xff]
    %v562 = vld [vmem:[%s558 + $0x18] sm:$0xff]
    %v563 = vld [vmem:[%s558 + $0x20] sm:$0xff]
    %v564 = vld [vmem:[%s558 + $0x28] sm:$0xff]
    %v565 = vld [vmem:[%s558 + $0x30] sm:$0xff]
    %v566 = vld [vmem:[%s558 + $0x38] sm:$0xff]
    %v567 = vld [vmem:[%s558 + $0x40] sm:$0xff]
    %v568 = vld [vmem:[%s558 + $0x48] sm:$0xff]
    %v569 = vld [vmem:[%s558 + $0x50] sm:$0xff]
    %v570 = vld [vmem:[%s558 + $0x58] sm:$0xff]
    %v571 = vld [vmem:[%s558 + $0x60] sm:$0xff]
    %v572 = vld [vmem:[%s558 + $0x68] sm:$0xff]
    %v573 = vld [vmem:[%s558 + $0x70] sm:$0xff]
    %v574 = vld [vmem:[%s558 + $0x78] sm:$0xff]
    %v575 = vld [vmem:[%s558 + $0x80] sm:$0xff]
    %v576 = vld [vmem:[%s558 + $0x88] sm:$0xff]
    %v577 = vld [vmem:[%s558 + $0x90] sm:$0xff]
    %v578 = vld [vmem:[%s558 + $0x98] sm:$0xff]
    %v579 = vld [vmem:[%s558 + $0xa0] sm:$0xff]
    %v580 = vld [vmem:[%s558 + $0xa8] sm:$0xff]
    %v581 = vld [vmem:[%s558 + $0xb0] sm:$0xff]
    %v582 = vld [vmem:[%s558 + $0xb8] sm:$0xff]
    %v583 = vld [vmem:[%s558 + $0xc0] sm:$0xff]
    %v584 = vld [vmem:[%s558 + $0xc8] sm:$0xff]
    %v585 = vld [vmem:[%s558 + $0xd0] sm:$0xff]
    %v586 = vld [vmem:[%s558 + $0xd8] sm:$0xff]
    %v587 = vld [vmem:[%s558 + $0xe0] sm:$0xff]
    %v588 = vld [vmem:[%s558 + $0xe8] sm:$0xff]
    %v589 = vld [vmem:[%s558 + $0xf0] sm:$0xff]
    %v590 = vld [vmem:[%s558 + $0xf8] sm:$0xff]
    %v591 = vld [vmem:[%s558 + $0x100] sm:$0xff]
    %v592 = vld [vmem:[%s558 + $0x108] sm:$0xff]
    %v593 = vld [vmem:[%s558 + $0x110] sm:$0xff]
    %v594 = vld [vmem:[%s558 + $0x118] sm:$0xff]
    %v595 = vld [vmem:[%s558 + $0x120] sm:$0xff]
    %v596 = vld [vmem:[%s558 + $0x128] sm:$0xff]
    %v597 = vld [vmem:[%s558 + $0x130] sm:$0xff]
    %v598 = vld [vmem:[%s558 + $0x138] sm:$0xff]
    %v599 = vld [vmem:[%s558 + $0x140] sm:$0xff]
    %v600 = vld [vmem:[%s558 + $0x148] sm:$0xff]
    %v601 = vld [vmem:[%s558 + $0x150] sm:$0xff]
    %v602 = vld [vmem:[%s558 + $0x158] sm:$0xff]
    %v603 = vld [vmem:[%s558 + $0x160] sm:$0xff]
    %v604 = vld [vmem:[%s558 + $0x168] sm:$0xff]
    %v605 = vld [vmem:[%s558 + $0x170] sm:$0xff]
    %v606 = vld [vmem:[%s558 + $0x178] sm:$0xff]
    %v607 = vld [vmem:[%s558 + $0x180] sm:$0xff]
    %v608 = vld [vmem:[%s558 + $0x188] sm:$0xff]
    %v609 = vld [vmem:[%s558 + $0x190] sm:$0xff]
    %v610 = vld [vmem:[%s558 + $0x198] sm:$0xff]
    %v611 = vld [vmem:[%s558 + $0x1a0] sm:$0xff]
    %v612 = vld [vmem:[%s558 + $0x1a8] sm:$0xff]
    %v613 = vld [vmem:[%s558 + $0x1b0] sm:$0xff]
    %v614 = vld [vmem:[%s558 + $0x1b8] sm:$0xff]
    %v615 = vld [vmem:[%s558 + $0x1c0] sm:$0xff]
    %v616 = vld [vmem:[%s558 + $0x1c8] sm:$0xff]
    %v617 = vld [vmem:[%s558 + $0x1d0] sm:$0xff]
    %v618 = vld [vmem:[%s558 + $0x1d8] sm:$0xff]
    %v619 = vld [vmem:[%s558 + $0x1e0] sm:$0xff]
    %v620 = vld [vmem:[%s558 + $0x1e8] sm:$0xff]
    %v621 = vld [vmem:[%s558 + $0x1f0] sm:$0xff]
    %v622 = vld [vmem:[%s558 + $0x1f8] sm:$0xff]
    %v623 = vstv %s557
    %v624 = vmul.f32 %v623, %v559
    %v625 = vmul.f32 %v623, %v560
    %v626 = vmul.f32 %v623, %v561
    %v627 = vmul.f32 %v623, %v562
    %v628 = vmul.f32 %v623, %v563
    %v629 = vmul.f32 %v623, %v564
    %v630 = vmul.f32 %v623, %v565
    %v631 = vmul.f32 %v623, %v566
    %v632 = vmul.f32 %v623, %v567
    %v633 = vmul.f32 %v623, %v568
    %v634 = vmul.f32 %v623, %v569
    %v635 = vmul.f32 %v623, %v570
    %v636 = vmul.f32 %v623, %v571
    %v637 = vmul.f32 %v623, %v572
    %v638 = vmul.f32 %v623, %v573
    %v639 = vmul.f32 %v623, %v574
    %v640 = vmul.f32 %v623, %v575
    %v641 = vmul.f32 %v623, %v576
    %v642 = vmul.f32 %v623, %v577
    %v643 = vmul.f32 %v623, %v578
    %v644 = vmul.f32 %v623, %v579
    %v645 = vmul.f32 %v623, %v580
    %v646 = vmul.f32 %v623, %v581
    %v647 = vmul.f32 %v623, %v582
    %v648 = vmul.f32 %v623, %v583
    %v649 = vmul.f32 %v623, %v584
    %v650 = vmul.f32 %v623, %v585
    %v651 = vmul.f32 %v623, %v586
    %v652 = vmul.f32 %v623, %v587
    %v653 = vmul.f32 %v623, %v588
    %v654 = vmul.f32 %v623, %v589
    %v655 = vmul.f32 %v623, %v590
    %v656 = vmul.f32 %v623, %v591
    %v657 = vmul.f32 %v623, %v592
    %v658 = vmul.f32 %v623, %v593
    %v659 = vmul.f32 %v623, %v594
    %v660 = vmul.f32 %v623, %v595
    %v661 = vmul.f32 %v623, %v596
    %v662 = vmul.f32 %v623, %v597
    %v663 = vmul.f32 %v623, %v598
    %v664 = vmul.f32 %v623, %v599
    %v665 = vmul.f32 %v623, %v600
    %v666 = vmul.f32 %v623, %v601
    %v667 = vmul.f32 %v623, %v602
    %v668 = vmul.f32 %v623, %v603
    %v669 = vmul.f32 %v623, %v604
    %v670 = vmul.f32 %v623, %v605
    %v671 = vmul.f32 %v623, %v606
    %v672 = vmul.f32 %v623, %v607
    %v673 = vmul.f32 %v623, %v608
    %v674 = vmul.f32 %v623, %v609
    %v675 = vmul.f32 %v623, %v610
    %v676 = vmul.f32 %v623, %v611
    %v677 = vmul.f32 %v623, %v612
    %v678 = vmul.f32 %v623, %v613
    %v679 = vmul.f32 %v623, %v614
    %v680 = vmul.f32 %v623, %v615
    %v681 = vmul.f32 %v623, %v616
    %v682 = vmul.f32 %v623, %v617
    %v683 = vmul.f32 %v623, %v618
    %v684 = vmul.f32 %v623, %v619
    %v685 = vmul.f32 %v623, %v620
    %v686 = vmul.f32 %v623, %v621
    %v687 = vmul.f32 %v623, %v622
    %v688 = vadd.f32 %v493, %v624
    %v689 = vadd.f32 %v494, %v625
    %v690 = vadd.f32 %v495, %v626
    %v691 = vadd.f32 %v496, %v627
    %v692 = vadd.f32 %v497, %v628
    %v693 = vadd.f32 %v498, %v629
    %v694 = vadd.f32 %v499, %v630
    %v695 = vadd.f32 %v500, %v631
    %v696 = vadd.f32 %v501, %v632
    %v697 = vadd.f32 %v502, %v633
    %v698 = vadd.f32 %v503, %v634
    %v699 = vadd.f32 %v504, %v635
    %v700 = vadd.f32 %v505, %v636
    %v701 = vadd.f32 %v506, %v637
    %v702 = vadd.f32 %v507, %v638
    %v703 = vadd.f32 %v508, %v639
    %v704 = vadd.f32 %v509, %v640
    %v705 = vadd.f32 %v510, %v641
    %v706 = vadd.f32 %v511, %v642
    %v707 = vadd.f32 %v512, %v643
    %v708 = vadd.f32 %v513, %v644
    %v709 = vadd.f32 %v514, %v645
    %v710 = vadd.f32 %v515, %v646
    %v711 = vadd.f32 %v516, %v647
    %v712 = vadd.f32 %v517, %v648
    %v713 = vadd.f32 %v518, %v649
    %v714 = vadd.f32 %v519, %v650
    %v715 = vadd.f32 %v520, %v651
    %v716 = vadd.f32 %v521, %v652
    %v717 = vadd.f32 %v522, %v653
    %v718 = vadd.f32 %v523, %v654
    %v719 = vadd.f32 %v524, %v655
    %v720 = vadd.f32 %v525, %v656
    %v721 = vadd.f32 %v526, %v657
    %v722 = vadd.f32 %v527, %v658
    %v723 = vadd.f32 %v528, %v659
    %v724 = vadd.f32 %v529, %v660
    %v725 = vadd.f32 %v530, %v661
    %v726 = vadd.f32 %v531, %v662
    %v727 = vadd.f32 %v532, %v663
    %v728 = vadd.f32 %v533, %v664
    %v729 = vadd.f32 %v534, %v665
    %v730 = vadd.f32 %v535, %v666
    %v731 = vadd.f32 %v536, %v667
    %v732 = vadd.f32 %v537, %v668
    %v733 = vadd.f32 %v538, %v669
    %v734 = vadd.f32 %v539, %v670
    %v735 = vadd.f32 %v540, %v671
    %v736 = vadd.f32 %v541, %v672
    %v737 = vadd.f32 %v542, %v673
    %v738 = vadd.f32 %v543, %v674
    %v739 = vadd.f32 %v544, %v675
    %v740 = vadd.f32 %v545, %v676
    %v741 = vadd.f32 %v546, %v677
    %v742 = vadd.f32 %v547, %v678
    %v743 = vadd.f32 %v548, %v679
    %v744 = vadd.f32 %v549, %v680
    %v745 = vadd.f32 %v550, %v681
    %v746 = vadd.f32 %v551, %v682
    %v747 = vadd.f32 %v552, %v683
    %v748 = vadd.f32 %v553, %v684
    %v749 = vadd.f32 %v554, %v685
    %v750 = vadd.f32 %v555, %v686
    %v751 = vadd.f32 %v556, %v687
    %752 = vst [vmem:[#allocation7] sm:$0xff] %v688
    %753 = vst [vmem:[#allocation7 + $0x8] sm:$0xff] %v689
    %754 = vst [vmem:[#allocation7 + $0x10] sm:$0xff] %v690
    %755 = vst [vmem:[#allocation7 + $0x18] sm:$0xff] %v691
    %756 = vst [vmem:[#allocation7 + $0x20] sm:$0xff] %v692
    %757 = vst [vmem:[#allocation7 + $0x28] sm:$0xff] %v693
    %758 = vst [vmem:[#allocation7 + $0x30] sm:$0xff] %v694
    %759 = vst [vmem:[#allocation7 + $0x38] sm:$0xff] %v695
    %760 = vst [vmem:[#allocation7 + $0x40] sm:$0xff] %v696
    %761 = vst [vmem:[#allocation7 + $0x48] sm:$0xff] %v697
    %762 = vst [vmem:[#allocation7 + $0x50] sm:$0xff] %v698
    %763 = vst [vmem:[#allocation7 + $0x58] sm:$0xff] %v699
    %764 = vst [vmem:[#allocation7 + $0x60] sm:$0xff] %v700
    %765 = vst [vmem:[#allocation7 + $0x68] sm:$0xff] %v701
    %766 = vst [vmem:[#allocation7 + $0x70] sm:$0xff] %v702
    %767 = vst [vmem:[#allocation7 + $0x78] sm:$0xff] %v703
    %768 = vst [vmem:[#allocation7 + $0x80] sm:$0xff] %v704
    %769 = vst [vmem:[#allocation7 + $0x88] sm:$0xff] %v705
    %770 = vst [vmem:[#allocation7 + $0x90] sm:$0xff] %v706
    %771 = vst [vmem:[#allocation7 + $0x98] sm:$0xff] %v707
    %772 = vst [vmem:[#allocation7 + $0xa0] sm:$0xff] %v708
    %773 = vst [vmem:[#allocation7 + $0xa8] sm:$0xff] %v709
    %774 = vst [vmem:[#allocation7 + $0xb0] sm:$0xff] %v710
    %775 = vst [vmem:[#allocation7 + $0xb8] sm:$0xff] %v711
    %776 = vst [vmem:[#allocation7 + $0xc0] sm:$0xff] %v712
    %777 = vst [vmem:[#allocation7 + $0xc8] sm:$0xff] %v713
    %778 = vst [vmem:[#allocation7 + $0xd0] sm:$0xff] %v714
    %779 = vst [vmem:[#allocation7 + $0xd8] sm:$0xff] %v715
    %780 = vst [vmem:[#allocation7 + $0xe0] sm:$0xff] %v716
    %781 = vst [vmem:[#allocation7 + $0xe8] sm:$0xff] %v717
    %782 = vst [vmem:[#allocation7 + $0xf0] sm:$0xff] %v718
    %783 = vst [vmem:[#allocation7 + $0xf8] sm:$0xff] %v719
    %784 = vst [vmem:[#allocation7 + $0x100] sm:$0xff] %v720
    %785 = vst [vmem:[#allocation7 + $0x108] sm:$0xff] %v721
    %786 = vst [vmem:[#allocation7 + $0x110] sm:$0xff] %v722
    %787 = vst [vmem:[#allocation7 + $0x118] sm:$0xff] %v723
    %788 = vst [vmem:[#allocation7 + $0x120] sm:$0xff] %v724
    %789 = vst [vmem:[#allocation7 + $0x128] sm:$0xff] %v725
    %790 = vst [vmem:[#allocation7 + $0x130] sm:$0xff] %v726
    %791 = vst [vmem:[#allocation7 + $0x138] sm:$0xff] %v727
    %792 = vst [vmem:[#allocation7 + $0x140] sm:$0xff] %v728
    %793 = vst [vmem:[#allocation7 + $0x148] sm:$0xff] %v729
    %794 = vst [vmem:[#allocation7 + $0x150] sm:$0xff] %v730
    %795 = vst [vmem:[#allocation7 + $0x158] sm:$0xff] %v731
    %796 = vst [vmem:[#allocation7 + $0x160] sm:$0xff] %v732
    %797 = vst [vmem:[#allocation7 + $0x168] sm:$0xff] %v733
    %798 = vst [vmem:[#allocation7 + $0x170] sm:$0xff] %v734
    %799 = vst [vmem:[#allocation7 + $0x178] sm:$0xff] %v735
    %800 = vst [vmem:[#allocation7 + $0x180] sm:$0xff] %v736
    %801 = vst [vmem:[#allocation7 + $0x188] sm:$0xff] %v737
    %802 = vst [vmem:[#allocation7 + $0x190] sm:$0xff] %v738
    %803 = vst [vmem:[#allocation7 + $0x198] sm:$0xff] %v739
    %804 = vst [vmem:[#allocation7 + $0x1a0] sm:$0xff] %v740
    %805 = vst [vmem:[#allocation7 + $0x1a8] sm:$0xff] %v741
    %806 = vst [vmem:[#allocation7 + $0x1b0] sm:$0xff] %v742
    %807 = vst [vmem:[#allocation7 + $0x1b8] sm:$0xff] %v743
    %808 = vst [vmem:[#allocation7 + $0x1c0] sm:$0xff] %v744
    %809 = vst [vmem:[#allocation7 + $0x1c8] sm:$0xff] %v745
    %810 = vst [vmem:[#allocation7 + $0x1d0] sm:$0xff] %v746
    %811 = vst [vmem:[#allocation7 + $0x1d8] sm:$0xff] %v747
    %812 = vst [vmem:[#allocation7 + $0x1e0] sm:$0xff] %v748
    %813 = vst [vmem:[#allocation7 + $0x1e8] sm:$0xff] %v749
    %814 = vst [vmem:[#allocation7 + $0x1f0] sm:$0xff] %v750
    %815 = vst [vmem:[#allocation7 + $0x1f8] sm:$0xff] %v751
    %s816 = sld [smem:[#allocation2 + $0x80]]
    %v817 = vld [vmem:[#allocation6] sm:$0xff]
    %v818 = vld [vmem:[#allocation6 + $0x8] sm:$0xff]
    %v819 = vld [vmem:[#allocation6 + $0x10] sm:$0xff]
    %v820 = vld [vmem:[#allocation6 + $0x18] sm:$0xff]
    %v821 = vld [vmem:[#allocation6 + $0x20] sm:$0xff]
    %v822 = vld [vmem:[#allocation6 + $0x28] sm:$0xff]
    %v823 = vld [vmem:[#allocation6 + $0x30] sm:$0xff]
    %v824 = vld [vmem:[#allocation6 + $0x38] sm:$0xff]
    %v825 = vld [vmem:[#allocation6 + $0x40] sm:$0xff]
    %v826 = vld [vmem:[#allocation6 + $0x48] sm:$0xff]
    %v827 = vld [vmem:[#allocation6 + $0x50] sm:$0xff]
    %v828 = vld [vmem:[#allocation6 + $0x58] sm:$0xff]
    %v829 = vld [vmem:[#allocation6 + $0x60] sm:$0xff]
    %v830 = vld [vmem:[#allocation6 + $0x68] sm:$0xff]
    %v831 = vld [vmem:[#allocation6 + $0x70] sm:$0xff]
    %v832 = vld [vmem:[#allocation6 + $0x78] sm:$0xff]
    %v833 = vld [vmem:[#allocation6 + $0x80] sm:$0xff]
    %v834 = vld [vmem:[#allocation6 + $0x88] sm:$0xff]
    %v835 = vld [vmem:[#allocation6 + $0x90] sm:$0xff]
    %v836 = vld [vmem:[#allocation6 + $0x98] sm:$0xff]
    %v837 = vld [vmem:[#allocation6 + $0xa0] sm:$0xff]
    %v838 = vld [vmem:[#allocation6 + $0xa8] sm:$0xff]
    %v839 = vld [vmem:[#allocation6 + $0xb0] sm:$0xff]
    %v840 = vld [vmem:[#allocation6 + $0xb8] sm:$0xff]
    %v841 = vld [vmem:[#allocation6 + $0xc0] sm:$0xff]
    %v842 = vld [vmem:[#allocation6 + $0xc8] sm:$0xff]
    %v843 = vld [vmem:[#allocation6 + $0xd0] sm:$0xff]
    %v844 = vld [vmem:[#allocation6 + $0xd8] sm:$0xff]
    %v845 = vld [vmem:[#allocation6 + $0xe0] sm:$0xff]
    %v846 = vld [vmem:[#allocation6 + $0xe8] sm:$0xff]
    %v847 = vld [vmem:[#allocation6 + $0xf0] sm:$0xff]
    %v848 = vld [vmem:[#allocation6 + $0xf8] sm:$0xff]
    %v849 = vld [vmem:[#allocation6 + $0x100] sm:$0xff]
    %v850 = vld [vmem:[#allocation6 + $0x108] sm:$0xff]
    %v851 = vld [vmem:[#allocation6 + $0x110] sm:$0xff]
    %v852 = vld [vmem:[#allocation6 + $0x118] sm:$0xff]
    %v853 = vld [vmem:[#allocation6 + $0x120] sm:$0xff]
    %v854 = vld [vmem:[#allocation6 + $0x128] sm:$0xff]
    %v855 = vld [vmem:[#allocation6 + $0x130] sm:$0xff]
    %v856 = vld [vmem:[#allocation6 + $0x138] sm:$0xff]
    %v857 = vld [vmem:[#allocation6 + $0x140] sm:$0xff]
    %v858 = vld [vmem:[#allocation6 + $0x148] sm:$0xff]
    %v859 = vld [vmem:[#allocation6 + $0x150] sm:$0xff]
    %v860 = vld [vmem:[#allocation6 + $0x158] sm:$0xff]
    %v861 = vld [vmem:[#allocation6 + $0x160] sm:$0xff]
    %v862 = vld [vmem:[#allocation6 + $0x168] sm:$0xff]
    %v863 = vld [vmem:[#allocation6 + $0x170] sm:$0xff]
    %v864 = vld [vmem:[#allocation6 + $0x178] sm:$0xff]
    %v865 = vld [vmem:[#allocation6 + $0x180] sm:$0xff]
    %v866 = vld [vmem:[#allocation6 + $0x188] sm:$0xff]
    %v867 = vld [vmem:[#allocation6 + $0x190] sm:$0xff]
    %v868 = vld [vmem:[#allocation6 + $0x198] sm:$0xff]
    %v869 = vld [vmem:[#allocation6 + $0x1a0] sm:$0xff]
    %v870 = vld [vmem:[#allocation6 + $0x1a8] sm:$0xff]
    %v871 = vld [vmem:[#allocation6 + $0x1b0] sm:$0xff]
    %v872 = vld [vmem:[#allocation6 + $0x1b8] sm:$0xff]
    %v873 = vld [vmem:[#allocation6 + $0x1c0] sm:$0xff]
    %v874 = vld [vmem:[#allocation6 + $0x1c8] sm:$0xff]
    %v875 = vld [vmem:[#allocation6 + $0x1d0] sm:$0xff]
    %v876 = vld [vmem:[#allocation6 + $0x1d8] sm:$0xff]
    %v877 = vld [vmem:[#allocation6 + $0x1e0] sm:$0xff]
    %v878 = vld [vmem:[#allocation6 + $0x1e8] sm:$0xff]
    %v879 = vld [vmem:[#allocation6 + $0x1f0] sm:$0xff]
    %v880 = vld [vmem:[#allocation6 + $0x1f8] sm:$0xff]
    %v881 = vstv %s816
    %v882 = vmul.f32 %v881, %v817
    %v883 = vmul.f32 %v881, %v818
    %v884 = vmul.f32 %v881, %v819
    %v885 = vmul.f32 %v881, %v820
    %v886 = vmul.f32 %v881, %v821
    %v887 = vmul.f32 %v881, %v822
    %v888 = vmul.f32 %v881, %v823
    %v889 = vmul.f32 %v881, %v824
    %v890 = vmul.f32 %v881, %v825
    %v891 = vmul.f32 %v881, %v826
    %v892 = vmul.f32 %v881, %v827
    %v893 = vmul.f32 %v881, %v828
    %v894 = vmul.f32 %v881, %v829
    %v895 = vmul.f32 %v881, %v830
    %v896 = vmul.f32 %v881, %v831
    %v897 = vmul.f32 %v881, %v832
    %v898 = vmul.f32 %v881, %v833
    %v899 = vmul.f32 %v881, %v834
    %v900 = vmul.f32 %v881, %v835
    %v901 = vmul.f32 %v881, %v836
    %v902 = vmul.f32 %v881, %v837
    %v903 = vmul.f32 %v881, %v838
    %v904 = vmul.f32 %v881, %v839
    %v905 = vmul.f32 %v881, %v840
    %v906 = vmul.f32 %v881, %v841
    %v907 = vmul.f32 %v881, %v842
    %v908 = vmul.f32 %v881, %v843
    %v909 = vmul.f32 %v881, %v844
    %v910 = vmul.f32 %v881, %v845
    %v911 = vmul.f32 %v881, %v846
    %v912 = vmul.f32 %v881, %v847
    %v913 = vmul.f32 %v881, %v848
    %v914 = vmul.f32 %v881, %v849
    %v915 = vmul.f32 %v881, %v850
    %v916 = vmul.f32 %v881, %v851
    %v917 = vmul.f32 %v881, %v852
    %v918 = vmul.f32 %v881, %v853
    %v919 = vmul.f32 %v881, %v854
    %v920 = vmul.f32 %v881, %v855
    %v921 = vmul.f32 %v881, %v856
    %v922 = vmul.f32 %v881, %v857
    %v923 = vmul.f32 %v881, %v858
    %v924 = vmul.f32 %v881, %v859
    %v925 = vmul.f32 %v881, %v860
    %v926 = vmul.f32 %v881, %v861
    %v927 = vmul.f32 %v881, %v862
    %v928 = vmul.f32 %v881, %v863
    %v929 = vmul.f32 %v881, %v864
    %v930 = vmul.f32 %v881, %v865
    %v931 = vmul.f32 %v881, %v866
    %v932 = vmul.f32 %v881, %v867
    %v933 = vmul.f32 %v881, %v868
    %v934 = vmul.f32 %v881, %v869
    %v935 = vmul.f32 %v881, %v870
    %v936 = vmul.f32 %v881, %v871
    %v937 = vmul.f32 %v881, %v872
    %v938 = vmul.f32 %v881, %v873
    %v939 = vmul.f32 %v881, %v874
    %v940 = vmul.f32 %v881, %v875
    %v941 = vmul.f32 %v881, %v876
    %v942 = vmul.f32 %v881, %v877
    %v943 = vmul.f32 %v881, %v878
    %v944 = vmul.f32 %v881, %v879
    %v945 = vmul.f32 %v881, %v880
    %s946 = sld [smem:[#allocation2 + $0x81]]
    %v947 = vld [vmem:[%s168] sm:$0xff]
    %v948 = vld [vmem:[%s168 + $0x8] sm:$0xff]
    %v949 = vld [vmem:[%s168 + $0x10] sm:$0xff]
    %v950 = vld [vmem:[%s168 + $0x18] sm:$0xff]
    %v951 = vld [vmem:[%s168 + $0x20] sm:$0xff]
    %v952 = vld [vmem:[%s168 + $0x28] sm:$0xff]
    %v953 = vld [vmem:[%s168 + $0x30] sm:$0xff]
    %v954 = vld [vmem:[%s168 + $0x38] sm:$0xff]
    %v955 = vld [vmem:[%s168 + $0x40] sm:$0xff]
    %v956 = vld [vmem:[%s168 + $0x48] sm:$0xff]
    %v957 = vld [vmem:[%s168 + $0x50] sm:$0xff]
    %v958 = vld [vmem:[%s168 + $0x58] sm:$0xff]
    %v959 = vld [vmem:[%s168 + $0x60] sm:$0xff]
    %v960 = vld [vmem:[%s168 + $0x68] sm:$0xff]
    %v961 = vld [vmem:[%s168 + $0x70] sm:$0xff]
    %v962 = vld [vmem:[%s168 + $0x78] sm:$0xff]
    %v963 = vld [vmem:[%s168 + $0x80] sm:$0xff]
    %v964 = vld [vmem:[%s168 + $0x88] sm:$0xff]
    %v965 = vld [vmem:[%s168 + $0x90] sm:$0xff]
    %v966 = vld [vmem:[%s168 + $0x98] sm:$0xff]
    %v967 = vld [vmem:[%s168 + $0xa0] sm:$0xff]
    %v968 = vld [vmem:[%s168 + $0xa8] sm:$0xff]
    %v969 = vld [vmem:[%s168 + $0xb0] sm:$0xff]
    %v970 = vld [vmem:[%s168 + $0xb8] sm:$0xff]
    %v971 = vld [vmem:[%s168 + $0xc0] sm:$0xff]
    %v972 = vld [vmem:[%s168 + $0xc8] sm:$0xff]
    %v973 = vld [vmem:[%s168 + $0xd0] sm:$0xff]
    %v974 = vld [vmem:[%s168 + $0xd8] sm:$0xff]
    %v975 = vld [vmem:[%s168 + $0xe0] sm:$0xff]
    %v976 = vld [vmem:[%s168 + $0xe8] sm:$0xff]
    %v977 = vld [vmem:[%s168 + $0xf0] sm:$0xff]
    %v978 = vld [vmem:[%s168 + $0xf8] sm:$0xff]
    %v979 = vld [vmem:[%s168 + $0x100] sm:$0xff]
    %v980 = vld [vmem:[%s168 + $0x108] sm:$0xff]
    %v981 = vld [vmem:[%s168 + $0x110] sm:$0xff]
    %v982 = vld [vmem:[%s168 + $0x118] sm:$0xff]
    %v983 = vld [vmem:[%s168 + $0x120] sm:$0xff]
    %v984 = vld [vmem:[%s168 + $0x128] sm:$0xff]
    %v985 = vld [vmem:[%s168 + $0x130] sm:$0xff]
    %v986 = vld [vmem:[%s168 + $0x138] sm:$0xff]
    %v987 = vld [vmem:[%s168 + $0x140] sm:$0xff]
    %v988 = vld [vmem:[%s168 + $0x148] sm:$0xff]
    %v989 = vld [vmem:[%s168 + $0x150] sm:$0xff]
    %v990 = vld [vmem:[%s168 + $0x158] sm:$0xff]
    %v991 = vld [vmem:[%s168 + $0x160] sm:$0xff]
    %v992 = vld [vmem:[%s168 + $0x168] sm:$0xff]
    %v993 = vld [vmem:[%s168 + $0x170] sm:$0xff]
    %v994 = vld [vmem:[%s168 + $0x178] sm:$0xff]
    %v995 = vld [vmem:[%s168 + $0x180] sm:$0xff]
    %v996 = vld [vmem:[%s168 + $0x188] sm:$0xff]
    %v997 = vld [vmem:[%s168 + $0x190] sm:$0xff]
    %v998 = vld [vmem:[%s168 + $0x198] sm:$0xff]
    %v999 = vld [vmem:[%s168 + $0x1a0] sm:$0xff]
    %v1000 = vld [vmem:[%s168 + $0x1a8] sm:$0xff]
    %v1001 = vld [vmem:[%s168 + $0x1b0] sm:$0xff]
    %v1002 = vld [vmem:[%s168 + $0x1b8] sm:$0xff]
    %v1003 = vld [vmem:[%s168 + $0x1c0] sm:$0xff]
    %v1004 = vld [vmem:[%s168 + $0x1c8] sm:$0xff]
    %v1005 = vld [vmem:[%s168 + $0x1d0] sm:$0xff]
    %v1006 = vld [vmem:[%s168 + $0x1d8] sm:$0xff]
    %v1007 = vld [vmem:[%s168 + $0x1e0] sm:$0xff]
    %v1008 = vld [vmem:[%s168 + $0x1e8] sm:$0xff]
    %v1009 = vld [vmem:[%s168 + $0x1f0] sm:$0xff]
    %v1010 = vld [vmem:[%s168 + $0x1f8] sm:$0xff]
    %v1011 = vstv %s946
    %v1012 = vmul.f32 %v1011, %v947
    %v1013 = vmul.f32 %v1011, %v948
    %v1014 = vmul.f32 %v1011, %v949
    %v1015 = vmul.f32 %v1011, %v950
    %v1016 = vmul.f32 %v1011, %v951
    %v1017 = vmul.f32 %v1011, %v952
    %v1018 = vmul.f32 %v1011, %v953
    %v1019 = vmul.f32 %v1011, %v954
    %v1020 = vmul.f32 %v1011, %v955
    %v1021 = vmul.f32 %v1011, %v956
    %v1022 = vmul.f32 %v1011, %v957
    %v1023 = vmul.f32 %v1011, %v958
    %v1024 = vmul.f32 %v1011, %v959
    %v1025 = vmul.f32 %v1011, %v960
    %v1026 = vmul.f32 %v1011, %v961
    %v1027 = vmul.f32 %v1011, %v962
    %v1028 = vmul.f32 %v1011, %v963
    %v1029 = vmul.f32 %v1011, %v964
    %v1030 = vmul.f32 %v1011, %v965
    %v1031 = vmul.f32 %v1011, %v966
    %v1032 = vmul.f32 %v1011, %v967
    %v1033 = vmul.f32 %v1011, %v968
    %v1034 = vmul.f32 %v1011, %v969
    %v1035 = vmul.f32 %v1011, %v970
    %v1036 = vmul.f32 %v1011, %v971
    %v1037 = vmul.f32 %v1011, %v972
    %v1038 = vmul.f32 %v1011, %v973
    %v1039 = vmul.f32 %v1011, %v974
    %v1040 = vmul.f32 %v1011, %v975
    %v1041 = vmul.f32 %v1011, %v976
    %v1042 = vmul.f32 %v1011, %v977
    %v1043 = vmul.f32 %v1011, %v978
    %v1044 = vmul.f32 %v1011, %v979
    %v1045 = vmul.f32 %v1011, %v980
    %v1046 = vmul.f32 %v1011, %v981
    %v1047 = vmul.f32 %v1011, %v982
    %v1048 = vmul.f32 %v1011, %v983
    %v1049 = vmul.f32 %v1011, %v984
    %v1050 = vmul.f32 %v1011, %v985
    %v1051 = vmul.f32 %v1011, %v986
    %v1052 = vmul.f32 %v1011, %v987
    %v1053 = vmul.f32 %v1011, %v988
    %v1054 = vmul.f32 %v1011, %v989
    %v1055 = vmul.f32 %v1011, %v990
    %v1056 = vmul.f32 %v1011, %v991
    %v1057 = vmul.f32 %v1011, %v992
    %v1058 = vmul.f32 %v1011, %v993
    %v1059 = vmul.f32 %v1011, %v994
    %v1060 = vmul.f32 %v1011, %v995
    %v1061 = vmul.f32 %v1011, %v996
    %v1062 = vmul.f32 %v1011, %v997
    %v1063 = vmul.f32 %v1011, %v998
    %v1064 = vmul.f32 %v1011, %v999
    %v1065 = vmul.f32 %v1011, %v1000
    %v1066 = vmul.f32 %v1011, %v1001
    %v1067 = vmul.f32 %v1011, %v1002
    %v1068 = vmul.f32 %v1011, %v1003
    %v1069 = vmul.f32 %v1011, %v1004
    %v1070 = vmul.f32 %v1011, %v1005
    %v1071 = vmul.f32 %v1011, %v1006
    %v1072 = vmul.f32 %v1011, %v1007
    %v1073 = vmul.f32 %v1011, %v1008
    %v1074 = vmul.f32 %v1011, %v1009
    %v1075 = vmul.f32 %v1011, %v1010
    %v1076 = vadd.f32 %v882, %v1012
    %v1077 = vadd.f32 %v883, %v1013
    %v1078 = vadd.f32 %v884, %v1014
    %v1079 = vadd.f32 %v885, %v1015
    %v1080 = vadd.f32 %v886, %v1016
    %v1081 = vadd.f32 %v887, %v1017
    %v1082 = vadd.f32 %v888, %v1018
    %v1083 = vadd.f32 %v889, %v1019
    %v1084 = vadd.f32 %v890, %v1020
    %v1085 = vadd.f32 %v891, %v1021
    %v1086 = vadd.f32 %v892, %v1022
    %v1087 = vadd.f32 %v893, %v1023
    %v1088 = vadd.f32 %v894, %v1024
    %v1089 = vadd.f32 %v895, %v1025
    %v1090 = vadd.f32 %v896, %v1026
    %v1091 = vadd.f32 %v897, %v1027
    %v1092 = vadd.f32 %v898, %v1028
    %v1093 = vadd.f32 %v899, %v1029
    %v1094 = vadd.f32 %v900, %v1030
    %v1095 = vadd.f32 %v901, %v1031
    %v1096 = vadd.f32 %v902, %v1032
    %v1097 = vadd.f32 %v903, %v1033
    %v1098 = vadd.f32 %v904, %v1034
    %v1099 = vadd.f32 %v905, %v1035
    %v1100 = vadd.f32 %v906, %v1036
    %v1101 = vadd.f32 %v907, %v1037
    %v1102 = vadd.f32 %v908, %v1038
    %v1103 = vadd.f32 %v909, %v1039
    %v1104 = vadd.f32 %v910, %v1040
    %v1105 = vadd.f32 %v911, %v1041
    %v1106 = vadd.f32 %v912, %v1042
    %v1107 = vadd.f32 %v913, %v1043
    %v1108 = vadd.f32 %v914, %v1044
    %v1109 = vadd.f32 %v915, %v1045
    %v1110 = vadd.f32 %v916, %v1046
    %v1111 = vadd.f32 %v917, %v1047
    %v1112 = vadd.f32 %v918, %v1048
    %v1113 = vadd.f32 %v919, %v1049
    %v1114 = vadd.f32 %v920, %v1050
    %v1115 = vadd.f32 %v921, %v1051
    %v1116 = vadd.f32 %v922, %v1052
    %v1117 = vadd.f32 %v923, %v1053
    %v1118 = vadd.f32 %v924, %v1054
    %v1119 = vadd.f32 %v925, %v1055
    %v1120 = vadd.f32 %v926, %v1056
    %v1121 = vadd.f32 %v927, %v1057
    %v1122 = vadd.f32 %v928, %v1058
    %v1123 = vadd.f32 %v929, %v1059
    %v1124 = vadd.f32 %v930, %v1060
    %v1125 = vadd.f32 %v931, %v1061
    %v1126 = vadd.f32 %v932, %v1062
    %v1127 = vadd.f32 %v933, %v1063
    %v1128 = vadd.f32 %v934, %v1064
    %v1129 = vadd.f32 %v935, %v1065
    %v1130 = vadd.f32 %v936, %v1066
    %v1131 = vadd.f32 %v937, %v1067
    %v1132 = vadd.f32 %v938, %v1068
    %v1133 = vadd.f32 %v939, %v1069
    %v1134 = vadd.f32 %v940, %v1070
    %v1135 = vadd.f32 %v941, %v1071
    %v1136 = vadd.f32 %v942, %v1072
    %v1137 = vadd.f32 %v943, %v1073
    %v1138 = vadd.f32 %v944, %v1074
    %v1139 = vadd.f32 %v945, %v1075
    %s1140 = sld [smem:[#allocation2 + $0x82]]
    %v1141 = vld [vmem:[%s363] sm:$0xff]
    %v1142 = vld [vmem:[%s363 + $0x8] sm:$0xff]
    %v1143 = vld [vmem:[%s363 + $0x10] sm:$0xff]
    %v1144 = vld [vmem:[%s363 + $0x18] sm:$0xff]
    %v1145 = vld [vmem:[%s363 + $0x20] sm:$0xff]
    %v1146 = vld [vmem:[%s363 + $0x28] sm:$0xff]
    %v1147 = vld [vmem:[%s363 + $0x30] sm:$0xff]
    %v1148 = vld [vmem:[%s363 + $0x38] sm:$0xff]
    %v1149 = vld [vmem:[%s363 + $0x40] sm:$0xff]
    %v1150 = vld [vmem:[%s363 + $0x48] sm:$0xff]
    %v1151 = vld [vmem:[%s363 + $0x50] sm:$0xff]
    %v1152 = vld [vmem:[%s363 + $0x58] sm:$0xff]
    %v1153 = vld [vmem:[%s363 + $0x60] sm:$0xff]
    %v1154 = vld [vmem:[%s363 + $0x68] sm:$0xff]
    %v1155 = vld [vmem:[%s363 + $0x70] sm:$0xff]
    %v1156 = vld [vmem:[%s363 + $0x78] sm:$0xff]
    %v1157 = vld [vmem:[%s363 + $0x80] sm:$0xff]
    %v1158 = vld [vmem:[%s363 + $0x88] sm:$0xff]
    %v1159 = vld [vmem:[%s363 + $0x90] sm:$0xff]
    %v1160 = vld [vmem:[%s363 + $0x98] sm:$0xff]
    %v1161 = vld [vmem:[%s363 + $0xa0] sm:$0xff]
    %v1162 = vld [vmem:[%s363 + $0xa8] sm:$0xff]
    %v1163 = vld [vmem:[%s363 + $0xb0] sm:$0xff]
    %v1164 = vld [vmem:[%s363 + $0xb8] sm:$0xff]
    %v1165 = vld [vmem:[%s363 + $0xc0] sm:$0xff]
    %v1166 = vld [vmem:[%s363 + $0xc8] sm:$0xff]
    %v1167 = vld [vmem:[%s363 + $0xd0] sm:$0xff]
    %v1168 = vld [vmem:[%s363 + $0xd8] sm:$0xff]
    %v1169 = vld [vmem:[%s363 + $0xe0] sm:$0xff]
    %v1170 = vld [vmem:[%s363 + $0xe8] sm:$0xff]
    %v1171 = vld [vmem:[%s363 + $0xf0] sm:$0xff]
    %v1172 = vld [vmem:[%s363 + $0xf8] sm:$0xff]
    %v1173 = vld [vmem:[%s363 + $0x100] sm:$0xff]
    %v1174 = vld [vmem:[%s363 + $0x108] sm:$0xff]
    %v1175 = vld [vmem:[%s363 + $0x110] sm:$0xff]
    %v1176 = vld [vmem:[%s363 + $0x118] sm:$0xff]
    %v1177 = vld [vmem:[%s363 + $0x120] sm:$0xff]
    %v1178 = vld [vmem:[%s363 + $0x128] sm:$0xff]
    %v1179 = vld [vmem:[%s363 + $0x130] sm:$0xff]
    %v1180 = vld [vmem:[%s363 + $0x138] sm:$0xff]
    %v1181 = vld [vmem:[%s363 + $0x140] sm:$0xff]
    %v1182 = vld [vmem:[%s363 + $0x148] sm:$0xff]
    %v1183 = vld [vmem:[%s363 + $0x150] sm:$0xff]
    %v1184 = vld [vmem:[%s363 + $0x158] sm:$0xff]
    %v1185 = vld [vmem:[%s363 + $0x160] sm:$0xff]
    %v1186 = vld [vmem:[%s363 + $0x168] sm:$0xff]
    %v1187 = vld [vmem:[%s363 + $0x170] sm:$0xff]
    %v1188 = vld [vmem:[%s363 + $0x178] sm:$0xff]
    %v1189 = vld [vmem:[%s363 + $0x180] sm:$0xff]
    %v1190 = vld [vmem:[%s363 + $0x188] sm:$0xff]
    %v1191 = vld [vmem:[%s363 + $0x190] sm:$0xff]
    %v1192 = vld [vmem:[%s363 + $0x198] sm:$0xff]
    %v1193 = vld [vmem:[%s363 + $0x1a0] sm:$0xff]
    %v1194 = vld [vmem:[%s363 + $0x1a8] sm:$0xff]
    %v1195 = vld [vmem:[%s363 + $0x1b0] sm:$0xff]
    %v1196 = vld [vmem:[%s363 + $0x1b8] sm:$0xff]
    %v1197 = vld [vmem:[%s363 + $0x1c0] sm:$0xff]
    %v1198 = vld [vmem:[%s363 + $0x1c8] sm:$0xff]
    %v1199 = vld [vmem:[%s363 + $0x1d0] sm:$0xff]
    %v1200 = vld [vmem:[%s363 + $0x1d8] sm:$0xff]
    %v1201 = vld [vmem:[%s363 + $0x1e0] sm:$0xff]
    %v1202 = vld [vmem:[%s363 + $0x1e8] sm:$0xff]
    %v1203 = vld [vmem:[%s363 + $0x1f0] sm:$0xff]
    %v1204 = vld [vmem:[%s363 + $0x1f8] sm:$0xff]
    %v1205 = vstv %s1140
    %v1206 = vmul.f32 %v1205, %v1141
    %v1207 = vmul.f32 %v1205, %v1142
    %v1208 = vmul.f32 %v1205, %v1143
    %v1209 = vmul.f32 %v1205, %v1144
    %v1210 = vmul.f32 %v1205, %v1145
    %v1211 = vmul.f32 %v1205, %v1146
    %v1212 = vmul.f32 %v1205, %v1147
    %v1213 = vmul.f32 %v1205, %v1148
    %v1214 = vmul.f32 %v1205, %v1149
    %v1215 = vmul.f32 %v1205, %v1150
    %v1216 = vmul.f32 %v1205, %v1151
    %v1217 = vmul.f32 %v1205, %v1152
    %v1218 = vmul.f32 %v1205, %v1153
    %v1219 = vmul.f32 %v1205, %v1154
    %v1220 = vmul.f32 %v1205, %v1155
    %v1221 = vmul.f32 %v1205, %v1156
    %v1222 = vmul.f32 %v1205, %v1157
    %v1223 = vmul.f32 %v1205, %v1158
    %v1224 = vmul.f32 %v1205, %v1159
    %v1225 = vmul.f32 %v1205, %v1160
    %v1226 = vmul.f32 %v1205, %v1161
    %v1227 = vmul.f32 %v1205, %v1162
    %v1228 = vmul.f32 %v1205, %v1163
    %v1229 = vmul.f32 %v1205, %v1164
    %v1230 = vmul.f32 %v1205, %v1165
    %v1231 = vmul.f32 %v1205, %v1166
    %v1232 = vmul.f32 %v1205, %v1167
    %v1233 = vmul.f32 %v1205, %v1168
    %v1234 = vmul.f32 %v1205, %v1169
    %v1235 = vmul.f32 %v1205, %v1170
    %v1236 = vmul.f32 %v1205, %v1171
    %v1237 = vmul.f32 %v1205, %v1172
    %v1238 = vmul.f32 %v1205, %v1173
    %v1239 = vmul.f32 %v1205, %v1174
    %v1240 = vmul.f32 %v1205, %v1175
    %v1241 = vmul.f32 %v1205, %v1176
    %v1242 = vmul.f32 %v1205, %v1177
    %v1243 = vmul.f32 %v1205, %v1178
    %v1244 = vmul.f32 %v1205, %v1179
    %v1245 = vmul.f32 %v1205, %v1180
    %v1246 = vmul.f32 %v1205, %v1181
    %v1247 = vmul.f32 %v1205, %v1182
    %v1248 = vmul.f32 %v1205, %v1183
    %v1249 = vmul.f32 %v1205, %v1184
    %v1250 = vmul.f32 %v1205, %v1185
    %v1251 = vmul.f32 %v1205, %v1186
    %v1252 = vmul.f32 %v1205, %v1187
    %v1253 = vmul.f32 %v1205, %v1188
    %v1254 = vmul.f32 %v1205, %v1189
    %v1255 = vmul.f32 %v1205, %v1190
    %v1256 = vmul.f32 %v1205, %v1191
    %v1257 = vmul.f32 %v1205, %v1192
    %v1258 = vmul.f32 %v1205, %v1193
    %v1259 = vmul.f32 %v1205, %v1194
    %v1260 = vmul.f32 %v1205, %v1195
    %v1261 = vmul.f32 %v1205, %v1196
    %v1262 = vmul.f32 %v1205, %v1197
    %v1263 = vmul.f32 %v1205, %v1198
    %v1264 = vmul.f32 %v1205, %v1199
    %v1265 = vmul.f32 %v1205, %v1200
    %v1266 = vmul.f32 %v1205, %v1201
    %v1267 = vmul.f32 %v1205, %v1202
    %v1268 = vmul.f32 %v1205, %v1203
    %v1269 = vmul.f32 %v1205, %v1204
    %v1270 = vadd.f32 %v1076, %v1206
    %v1271 = vadd.f32 %v1077, %v1207
    %v1272 = vadd.f32 %v1078, %v1208
    %v1273 = vadd.f32 %v1079, %v1209
    %v1274 = vadd.f32 %v1080, %v1210
    %v1275 = vadd.f32 %v1081, %v1211
    %v1276 = vadd.f32 %v1082, %v1212
    %v1277 = vadd.f32 %v1083, %v1213
    %v1278 = vadd.f32 %v1084, %v1214
    %v1279 = vadd.f32 %v1085, %v1215
    %v1280 = vadd.f32 %v1086, %v1216
    %v1281 = vadd.f32 %v1087, %v1217
    %v1282 = vadd.f32 %v1088, %v1218
    %v1283 = vadd.f32 %v1089, %v1219
    %v1284 = vadd.f32 %v1090, %v1220
    %v1285 = vadd.f32 %v1091, %v1221
    %v1286 = vadd.f32 %v1092, %v1222
    %v1287 = vadd.f32 %v1093, %v1223
    %v1288 = vadd.f32 %v1094, %v1224
    %v1289 = vadd.f32 %v1095, %v1225
    %v1290 = vadd.f32 %v1096, %v1226
    %v1291 = vadd.f32 %v1097, %v1227
    %v1292 = vadd.f32 %v1098, %v1228
    %v1293 = vadd.f32 %v1099, %v1229
    %v1294 = vadd.f32 %v1100, %v1230
    %v1295 = vadd.f32 %v1101, %v1231
    %v1296 = vadd.f32 %v1102, %v1232
    %v1297 = vadd.f32 %v1103, %v1233
    %v1298 = vadd.f32 %v1104, %v1234
    %v1299 = vadd.f32 %v1105, %v1235
    %v1300 = vadd.f32 %v1106, %v1236
    %v1301 = vadd.f32 %v1107, %v1237
    %v1302 = vadd.f32 %v1108, %v1238
    %v1303 = vadd.f32 %v1109, %v1239
    %v1304 = vadd.f32 %v1110, %v1240
    %v1305 = vadd.f32 %v1111, %v1241
    %v1306 = vadd.f32 %v1112, %v1242
    %v1307 = vadd.f32 %v1113, %v1243
    %v1308 = vadd.f32 %v1114, %v1244
    %v1309 = vadd.f32 %v1115, %v1245
    %v1310 = vadd.f32 %v1116, %v1246
    %v1311 = vadd.f32 %v1117, %v1247
    %v1312 = vadd.f32 %v1118, %v1248
    %v1313 = vadd.f32 %v1119, %v1249
    %v1314 = vadd.f32 %v1120, %v1250
    %v1315 = vadd.f32 %v1121, %v1251
    %v1316 = vadd.f32 %v1122, %v1252
    %v1317 = vadd.f32 %v1123, %v1253
    %v1318 = vadd.f32 %v1124, %v1254
    %v1319 = vadd.f32 %v1125, %v1255
    %v1320 = vadd.f32 %v1126, %v1256
    %v1321 = vadd.f32 %v1127, %v1257
    %v1322 = vadd.f32 %v1128, %v1258
    %v1323 = vadd.f32 %v1129, %v1259
    %v1324 = vadd.f32 %v1130, %v1260
    %v1325 = vadd.f32 %v1131, %v1261
    %v1326 = vadd.f32 %v1132, %v1262
    %v1327 = vadd.f32 %v1133, %v1263
    %v1328 = vadd.f32 %v1134, %v1264
    %v1329 = vadd.f32 %v1135, %v1265
    %v1330 = vadd.f32 %v1136, %v1266
    %v1331 = vadd.f32 %v1137, %v1267
    %v1332 = vadd.f32 %v1138, %v1268
    %v1333 = vadd.f32 %v1139, %v1269
    %s1334 = sld [smem:[#allocation2 + $0x83]]
    %v1335 = vld [vmem:[%s558] sm:$0xff]
    %v1336 = vld [vmem:[%s558 + $0x8] sm:$0xff]
    %v1337 = vld [vmem:[%s558 + $0x10] sm:$0xff]
    %v1338 = vld [vmem:[%s558 + $0x18] sm:$0xff]
    %v1339 = vld [vmem:[%s558 + $0x20] sm:$0xff]
    %v1340 = vld [vmem:[%s558 + $0x28] sm:$0xff]
    %v1341 = vld [vmem:[%s558 + $0x30] sm:$0xff]
    %v1342 = vld [vmem:[%s558 + $0x38] sm:$0xff]
    %v1343 = vld [vmem:[%s558 + $0x40] sm:$0xff]
    %v1344 = vld [vmem:[%s558 + $0x48] sm:$0xff]
    %v1345 = vld [vmem:[%s558 + $0x50] sm:$0xff]
    %v1346 = vld [vmem:[%s558 + $0x58] sm:$0xff]
    %v1347 = vld [vmem:[%s558 + $0x60] sm:$0xff]
    %v1348 = vld [vmem:[%s558 + $0x68] sm:$0xff]
    %v1349 = vld [vmem:[%s558 + $0x70] sm:$0xff]
    %v1350 = vld [vmem:[%s558 + $0x78] sm:$0xff]
    %v1351 = vld [vmem:[%s558 + $0x80] sm:$0xff]
    %v1352 = vld [vmem:[%s558 + $0x88] sm:$0xff]
    %v1353 = vld [vmem:[%s558 + $0x90] sm:$0xff]
    %v1354 = vld [vmem:[%s558 + $0x98] sm:$0xff]
    %v1355 = vld [vmem:[%s558 + $0xa0] sm:$0xff]
    %v1356 = vld [vmem:[%s558 + $0xa8] sm:$0xff]
    %v1357 = vld [vmem:[%s558 + $0xb0] sm:$0xff]
    %v1358 = vld [vmem:[%s558 + $0xb8] sm:$0xff]
    %v1359 = vld [vmem:[%s558 + $0xc0] sm:$0xff]
    %v1360 = vld [vmem:[%s558 + $0xc8] sm:$0xff]
    %v1361 = vld [vmem:[%s558 + $0xd0] sm:$0xff]
    %v1362 = vld [vmem:[%s558 + $0xd8] sm:$0xff]
    %v1363 = vld [vmem:[%s558 + $0xe0] sm:$0xff]
    %v1364 = vld [vmem:[%s558 + $0xe8] sm:$0xff]
    %v1365 = vld [vmem:[%s558 + $0xf0] sm:$0xff]
    %v1366 = vld [vmem:[%s558 + $0xf8] sm:$0xff]
    %v1367 = vld [vmem:[%s558 + $0x100] sm:$0xff]
    %v1368 = vld [vmem:[%s558 + $0x108] sm:$0xff]
    %v1369 = vld [vmem:[%s558 + $0x110] sm:$0xff]
    %v1370 = vld [vmem:[%s558 + $0x118] sm:$0xff]
    %v1371 = vld [vmem:[%s558 + $0x120] sm:$0xff]
    %v1372 = vld [vmem:[%s558 + $0x128] sm:$0xff]
    %v1373 = vld [vmem:[%s558 + $0x130] sm:$0xff]
    %v1374 = vld [vmem:[%s558 + $0x138] sm:$0xff]
    %v1375 = vld [vmem:[%s558 + $0x140] sm:$0xff]
    %v1376 = vld [vmem:[%s558 + $0x148] sm:$0xff]
    %v1377 = vld [vmem:[%s558 + $0x150] sm:$0xff]
    %v1378 = vld [vmem:[%s558 + $0x158] sm:$0xff]
    %v1379 = vld [vmem:[%s558 + $0x160] sm:$0xff]
    %v1380 = vld [vmem:[%s558 + $0x168] sm:$0xff]
    %v1381 = vld [vmem:[%s558 + $0x170] sm:$0xff]
    %v1382 = vld [vmem:[%s558 + $0x178] sm:$0xff]
    %v1383 = vld [vmem:[%s558 + $0x180] sm:$0xff]
    %v1384 = vld [vmem:[%s558 + $0x188] sm:$0xff]
    %v1385 = vld [vmem:[%s558 + $0x190] sm:$0xff]
    %v1386 = vld [vmem:[%s558 + $0x198] sm:$0xff]
    %v1387 = vld [vmem:[%s558 + $0x1a0] sm:$0xff]
    %v1388 = vld [vmem:[%s558 + $0x1a8] sm:$0xff]
    %v1389 = vld [vmem:[%s558 + $0x1b0] sm:$0xff]
    %v1390 = vld [vmem:[%s558 + $0x1b8] sm:$0xff]
    %v1391 = vld [vmem:[%s558 + $0x1c0] sm:$0xff]
    %v1392 = vld [vmem:[%s558 + $0x1c8] sm:$0xff]
    %v1393 = vld [vmem:[%s558 + $0x1d0] sm:$0xff]
    %v1394 = vld [vmem:[%s558 + $0x1d8] sm:$0xff]
    %v1395 = vld [vmem:[%s558 + $0x1e0] sm:$0xff]
    %v1396 = vld [vmem:[%s558 + $0x1e8] sm:$0xff]
    %v1397 = vld [vmem:[%s558 + $0x1f0] sm:$0xff]
    %v1398 = vld [vmem:[%s558 + $0x1f8] sm:$0xff]
    %v1399 = vstv %s1334
    %v1400 = vmul.f32 %v1399, %v1335
    %v1401 = vmul.f32 %v1399, %v1336
    %v1402 = vmul.f32 %v1399, %v1337
    %v1403 = vmul.f32 %v1399, %v1338
    %v1404 = vmul.f32 %v1399, %v1339
    %v1405 = vmul.f32 %v1399, %v1340
    %v1406 = vmul.f32 %v1399, %v1341
    %v1407 = vmul.f32 %v1399, %v1342
    %v1408 = vmul.f32 %v1399, %v1343
    %v1409 = vmul.f32 %v1399, %v1344
    %v1410 = vmul.f32 %v1399, %v1345
    %v1411 = vmul.f32 %v1399, %v1346
    %v1412 = vmul.f32 %v1399, %v1347
    %v1413 = vmul.f32 %v1399, %v1348
    %v1414 = vmul.f32 %v1399, %v1349
    %v1415 = vmul.f32 %v1399, %v1350
    %v1416 = vmul.f32 %v1399, %v1351
    %v1417 = vmul.f32 %v1399, %v1352
    %v1418 = vmul.f32 %v1399, %v1353
    %v1419 = vmul.f32 %v1399, %v1354
    %v1420 = vmul.f32 %v1399, %v1355
    %v1421 = vmul.f32 %v1399, %v1356
    %v1422 = vmul.f32 %v1399, %v1357
    %v1423 = vmul.f32 %v1399, %v1358
    %v1424 = vmul.f32 %v1399, %v1359
    %v1425 = vmul.f32 %v1399, %v1360
    %v1426 = vmul.f32 %v1399, %v1361
    %v1427 = vmul.f32 %v1399, %v1362
    %v1428 = vmul.f32 %v1399, %v1363
    %v1429 = vmul.f32 %v1399, %v1364
    %v1430 = vmul.f32 %v1399, %v1365
    %v1431 = vmul.f32 %v1399, %v1366
    %v1432 = vmul.f32 %v1399, %v1367
    %v1433 = vmul.f32 %v1399, %v1368
    %v1434 = vmul.f32 %v1399, %v1369
    %v1435 = vmul.f32 %v1399, %v1370
    %v1436 = vmul.f32 %v1399, %v1371
    %v1437 = vmul.f32 %v1399, %v1372
    %v1438 = vmul.f32 %v1399, %v1373
    %v1439 = vmul.f32 %v1399, %v1374
    %v1440 = vmul.f32 %v1399, %v1375
    %v1441 = vmul.f32 %v1399, %v1376
    %v1442 = vmul.f32 %v1399, %v1377
    %v1443 = vmul.f32 %v1399, %v1378
    %v1444 = vmul.f32 %v1399, %v1379
    %v1445 = vmul.f32 %v1399, %v1380
    %v1446 = vmul.f32 %v1399, %v1381
    %v1447 = vmul.f32 %v1399, %v1382
    %v1448 = vmul.f32 %v1399, %v1383
    %v1449 = vmul.f32 %v1399, %v1384
    %v1450 = vmul.f32 %v1399, %v1385
    %v1451 = vmul.f32 %v1399, %v1386
    %v1452 = vmul.f32 %v1399, %v1387
    %v1453 = vmul.f32 %v1399, %v1388
    %v1454 = vmul.f32 %v1399, %v1389
    %v1455 = vmul.f32 %v1399, %v1390
    %v1456 = vmul.f32 %v1399, %v1391
    %v1457 = vmul.f32 %v1399, %v1392
    %v1458 = vmul.f32 %v1399, %v1393
    %v1459 = vmul.f32 %v1399, %v1394
    %v1460 = vmul.f32 %v1399, %v1395
    %v1461 = vmul.f32 %v1399, %v1396
    %v1462 = vmul.f32 %v1399, %v1397
    %v1463 = vmul.f32 %v1399, %v1398
    %v1464 = vadd.f32 %v1270, %v1400
    %v1465 = vadd.f32 %v1271, %v1401
    %v1466 = vadd.f32 %v1272, %v1402
    %v1467 = vadd.f32 %v1273, %v1403
    %v1468 = vadd.f32 %v1274, %v1404
    %v1469 = vadd.f32 %v1275, %v1405
    %v1470 = vadd.f32 %v1276, %v1406
    %v1471 = vadd.f32 %v1277, %v1407
    %v1472 = vadd.f32 %v1278, %v1408
    %v1473 = vadd.f32 %v1279, %v1409
    %v1474 = vadd.f32 %v1280, %v1410
    %v1475 = vadd.f32 %v1281, %v1411
    %v1476 = vadd.f32 %v1282, %v1412
    %v1477 = vadd.f32 %v1283, %v1413
    %v1478 = vadd.f32 %v1284, %v1414
    %v1479 = vadd.f32 %v1285, %v1415
    %v1480 = vadd.f32 %v1286, %v1416
    %v1481 = vadd.f32 %v1287, %v1417
    %v1482 = vadd.f32 %v1288, %v1418
    %v1483 = vadd.f32 %v1289, %v1419
    %v1484 = vadd.f32 %v1290, %v1420
    %v1485 = vadd.f32 %v1291, %v1421
    %v1486 = vadd.f32 %v1292, %v1422
    %v1487 = vadd.f32 %v1293, %v1423
    %v1488 = vadd.f32 %v1294, %v1424
    %v1489 = vadd.f32 %v1295, %v1425
    %v1490 = vadd.f32 %v1296, %v1426
    %v1491 = vadd.f32 %v1297, %v1427
    %v1492 = vadd.f32 %v1298, %v1428
    %v1493 = vadd.f32 %v1299, %v1429
    %v1494 = vadd.f32 %v1300, %v1430
    %v1495 = vadd.f32 %v1301, %v1431
    %v1496 = vadd.f32 %v1302, %v1432
    %v1497 = vadd.f32 %v1303, %v1433
    %v1498 = vadd.f32 %v1304, %v1434
    %v1499 = vadd.f32 %v1305, %v1435
    %v1500 = vadd.f32 %v1306, %v1436
    %v1501 = vadd.f32 %v1307, %v1437
    %v1502 = vadd.f32 %v1308, %v1438
    %v1503 = vadd.f32 %v1309, %v1439
    %v1504 = vadd.f32 %v1310, %v1440
    %v1505 = vadd.f32 %v1311, %v1441
    %v1506 = vadd.f32 %v1312, %v1442
    %v1507 = vadd.f32 %v1313, %v1443
    %v1508 = vadd.f32 %v1314, %v1444
    %v1509 = vadd.f32 %v1315, %v1445
    %v1510 = vadd.f32 %v1316, %v1446
    %v1511 = vadd.f32 %v1317, %v1447
    %v1512 = vadd.f32 %v1318, %v1448
    %v1513 = vadd.f32 %v1319, %v1449
    %v1514 = vadd.f32 %v1320, %v1450
    %v1515 = vadd.f32 %v1321, %v1451
    %v1516 = vadd.f32 %v1322, %v1452
    %v1517 = vadd.f32 %v1323, %v1453
    %v1518 = vadd.f32 %v1324, %v1454
    %v1519 = vadd.f32 %v1325, %v1455
    %v1520 = vadd.f32 %v1326, %v1456
    %v1521 = vadd.f32 %v1327, %v1457
    %v1522 = vadd.f32 %v1328, %v1458
    %v1523 = vadd.f32 %v1329, %v1459
    %v1524 = vadd.f32 %v1330, %v1460
    %v1525 = vadd.f32 %v1331, %v1461
    %v1526 = vadd.f32 %v1332, %v1462
    %v1527 = vadd.f32 %v1333, %v1463
    %s1528 = scalar_lea.vmem [#allocation7], 512
    %1529 = vst [vmem:[%s1528] sm:$0xff] %v1464
    %1530 = vst [vmem:[%s1528 + $0x8] sm:$0xff] %v1465
    %1531 = vst [vmem:[%s1528 + $0x10] sm:$0xff] %v1466
    %1532 = vst [vmem:[%s1528 + $0x18] sm:$0xff] %v1467
    %1533 = vst [vmem:[%s1528 + $0x20] sm:$0xff] %v1468
    %1534 = vst [vmem:[%s1528 + $0x28] sm:$0xff] %v1469
    %1535 = vst [vmem:[%s1528 + $0x30] sm:$0xff] %v1470
    %1536 = vst [vmem:[%s1528 + $0x38] sm:$0xff] %v1471
    %1537 = vst [vmem:[%s1528 + $0x40] sm:$0xff] %v1472
    %1538 = vst [vmem:[%s1528 + $0x48] sm:$0xff] %v1473
    %1539 = vst [vmem:[%s1528 + $0x50] sm:$0xff] %v1474
    %1540 = vst [vmem:[%s1528 + $0x58] sm:$0xff] %v1475
    %1541 = vst [vmem:[%s1528 + $0x60] sm:$0xff] %v1476
    %1542 = vst [vmem:[%s1528 + $0x68] sm:$0xff] %v1477
    %1543 = vst [vmem:[%s1528 + $0x70] sm:$0xff] %v1478
    %1544 = vst [vmem:[%s1528 + $0x78] sm:$0xff] %v1479
    %1545 = vst [vmem:[%s1528 + $0x80] sm:$0xff] %v1480
    %1546 = vst [vmem:[%s1528 + $0x88] sm:$0xff] %v1481
    %1547 = vst [vmem:[%s1528 + $0x90] sm:$0xff] %v1482
    %1548 = vst [vmem:[%s1528 + $0x98] sm:$0xff] %v1483
    %1549 = vst [vmem:[%s1528 + $0xa0] sm:$0xff] %v1484
    %1550 = vst [vmem:[%s1528 + $0xa8] sm:$0xff] %v1485
    %1551 = vst [vmem:[%s1528 + $0xb0] sm:$0xff] %v1486
    %1552 = vst [vmem:[%s1528 + $0xb8] sm:$0xff] %v1487
    %1553 = vst [vmem:[%s1528 + $0xc0] sm:$0xff] %v1488
    %1554 = vst [vmem:[%s1528 + $0xc8] sm:$0xff] %v1489
    %1555 = vst [vmem:[%s1528 + $0xd0] sm:$0xff] %v1490
    %1556 = vst [vmem:[%s1528 + $0xd8] sm:$0xff] %v1491
    %1557 = vst [vmem:[%s1528 + $0xe0] sm:$0xff] %v1492
    %1558 = vst [vmem:[%s1528 + $0xe8] sm:$0xff] %v1493
    %1559 = vst [vmem:[%s1528 + $0xf0] sm:$0xff] %v1494
    %1560 = vst [vmem:[%s1528 + $0xf8] sm:$0xff] %v1495
    %1561 = vst [vmem:[%s1528 + $0x100] sm:$0xff] %v1496
    %1562 = vst [vmem:[%s1528 + $0x108] sm:$0xff] %v1497
    %1563 = vst [vmem:[%s1528 + $0x110] sm:$0xff] %v1498
    %1564 = vst [vmem:[%s1528 + $0x118] sm:$0xff] %v1499
    %1565 = vst [vmem:[%s1528 + $0x120] sm:$0xff] %v1500
    %1566 = vst [vmem:[%s1528 + $0x128] sm:$0xff] %v1501
    %1567 = vst [vmem:[%s1528 + $0x130] sm:$0xff] %v1502
    %1568 = vst [vmem:[%s1528 + $0x138] sm:$0xff] %v1503
    %1569 = vst [vmem:[%s1528 + $0x140] sm:$0xff] %v1504
    %1570 = vst [vmem:[%s1528 + $0x148] sm:$0xff] %v1505
    %1571 = vst [vmem:[%s1528 + $0x150] sm:$0xff] %v1506
    %1572 = vst [vmem:[%s1528 + $0x158] sm:$0xff] %v1507
    %1573 = vst [vmem:[%s1528 + $0x160] sm:$0xff] %v1508
    %1574 = vst [vmem:[%s1528 + $0x168] sm:$0xff] %v1509
    %1575 = vst [vmem:[%s1528 + $0x170] sm:$0xff] %v1510
    %1576 = vst [vmem:[%s1528 + $0x178] sm:$0xff] %v1511
    %1577 = vst [vmem:[%s1528 + $0x180] sm:$0xff] %v1512
    %1578 = vst [vmem:[%s1528 + $0x188] sm:$0xff] %v1513
    %1579 = vst [vmem:[%s1528 + $0x190] sm:$0xff] %v1514
    %1580 = vst [vmem:[%s1528 + $0x198] sm:$0xff] %v1515
    %1581 = vst [vmem:[%s1528 + $0x1a0] sm:$0xff] %v1516
    %1582 = vst [vmem:[%s1528 + $0x1a8] sm:$0xff] %v1517
    %1583 = vst [vmem:[%s1528 + $0x1b0] sm:$0xff] %v1518
    %1584 = vst [vmem:[%s1528 + $0x1b8] sm:$0xff] %v1519
    %1585 = vst [vmem:[%s1528 + $0x1c0] sm:$0xff] %v1520
    %1586 = vst [vmem:[%s1528 + $0x1c8] sm:$0xff] %v1521
    %1587 = vst [vmem:[%s1528 + $0x1d0] sm:$0xff] %v1522
    %1588 = vst [vmem:[%s1528 + $0x1d8] sm:$0xff] %v1523
    %1589 = vst [vmem:[%s1528 + $0x1e0] sm:$0xff] %v1524
    %1590 = vst [vmem:[%s1528 + $0x1e8] sm:$0xff] %v1525
    %1591 = vst [vmem:[%s1528 + $0x1f0] sm:$0xff] %v1526
    %1592 = vst [vmem:[%s1528 + $0x1f8] sm:$0xff] %v1527
    // Predicated region
    $region18: #{tpu_custom_call.1} parent=1 // pred_check
      _
    $region19: #{tpu_custom_call.1} parent=1 // pred_check_branch
      %1594 = sbr.rel (0) target = $region21
    $region20: #{tpu_custom_call.1} parent=1 // pred_region
      %s1596 = ssub.s32 16384, 16384
      %1597 = vsyncadd [#allocation4], %s1596
      %s1598 = sshll.u32 [#allocation7], 4
      %s1599 = int_to_ptr.vmem [resolvable:$true] %s1598
      %1604 = dma.vmem_to_hbm [thread:$0]  %s1599, 16384, %s2, [#allocation4], 256, 256, 16
    $region21: #{tpu_custom_call.1} parent=1 // pred_fallthru
      _
    // Predicated region
    $region22: #{tpu_custom_call.1} parent=1 // pred_check
      _
    $region23: #{tpu_custom_call.1} parent=1 // pred_check_branch
      %1606 = sbr.rel (0) target = $region25
    $region24: #{tpu_custom_call.1} parent=1 // pred_region
      %1607 = dma.done [#allocation4], 16384
    $region25: #{tpu_custom_call.1} parent=1 // pred_fallthru
      _
    %1608 = vsyncpa [#allocation3], 1
    %1609 = vsyncpa [#allocation4], 1
    %1610 = vsyncpa [#allocation5], 1

</llo_original>
